<compile_context>
chip_gen: v6e
topology: v6e:2x2x1
jax: 0.10.0
libtpu: 0.0.40
codegen_flags: <defaults>
</compile_context>

<pallas_src>
import math

import jax
import jax.numpy as jnp
from jax import lax
from jax.experimental import pallas as pl
from jax.experimental.pallas import tpu as pltpu

# ---- config constants (mirrors cfg.MODEL.METRIC_LEARN.*) ----
BACKBONE_DIM   = 2048      # res5 channels for conv ("res") backbone
NUM_CLASSES    = 128
SUBCENTRES_K   = 3
EMBED_DIM      = 128
MARGIN_M       = 0.5
FEATURE_SCALER = 30.0
EASY_MARGIN    = False
FOCAL_LOSS     = False     # ArcMarginModelLoss(focal_loss=False) -> plain cross-entropy
GAMMA          = 2.0

COS_M = math.cos(MARGIN_M)
SIN_M = math.sin(MARGIN_M)
TH    = math.cos(math.pi - MARGIN_M)
MM    = math.sin(math.pi - MARGIN_M) * MARGIN_M

# TODO(synk): build_backbone(cfg) (detectron2 ResNet) and preprocess_image pixel
# normalization are external to this module; the kernel starts from features['res5'].
# TODO(synk): ArcSubCentre neck_type variants (e.g. BN in the bottleneck) are not specified
# in the module source; the neck is modeled as Linear(in_features -> embedding_size).
# TODO(synk): streaming the features in bf16 (v6e/v7x bandwidth win, ~2x on the mem-bound
# feat path) is only worthwhile if the backbone emits bf16 directly; a separate wrapper-side
# f32->bf16 cast would re-read HBM and erase the win, so it is left disabled here.


def metric_kernel(feat_ref, labels_ref, wneck_ref, bneck_ref, wsub_t_ref,
                  cos_ref, sim_ref, lab_ref, ce_ref):
    """Fused avgpool + neck + sub-center cosine + arc-margin cross-entropy (one batch tile).

    feat_ref   : (Bt, HW, C) f32   res5 features, channels on the lane axis (lane-dense)
    labels_ref : (Bt, 1)     i32   class labels (padded rows are ignored by the wrapper)
    wneck_ref  : (C, E)      f32   bottleneck linear weight, pre-scaled by 1/HW (VMEM-resident)
    bneck_ref  : (1, E)      f32   bottleneck linear bias
    wsub_t_ref : (E, K*NC)   f32   pre-normalized, pre-transposed sub-center weights
    cos_ref    : (Bt, NC)    f32   classwise cosine similarities (out)
    sim_ref    : (Bt, 1)     f32   max similarity (out)
    lab_ref    : (Bt, 1)     i32   argmax class (out)
    ce_ref     : (Bt, 1)     f32   per-sample arc-margin cross-entropy (out)
    """
    Bt = feat_ref.shape[0]
    E, KNC = wsub_t_ref.shape
    NC = cos_ref.shape[1]
    K = KNC // NC

    # AdaptiveAvgPool2d((1, 1)) + flatten -> (Bt, C).  Sum over the sublane (HW) axis;
    # the 1/HW scale is folded into wneck in the wrapper.
    pooled = jnp.sum(feat_ref[...], axis=1)

    # bottleneck: Linear(C -> E) (weight carries the 1/HW scale), then L2-normalize embedding
    emb = jnp.dot(pooled, wneck_ref[...], preferred_element_type=jnp.float32) + bneck_ref[...]
    emb = emb * lax.rsqrt(jnp.sum(emb * emb, axis=-1, keepdims=True) + 1e-12)

    # cosine similarity to all K*NC sub-centers in one wide matmul, then max over K
    allcos = jnp.dot(emb, wsub_t_ref[...], preferred_element_type=jnp.float32)  # (Bt, K*NC)
    cos = allcos[:, 0:NC]
    for j in range(1, K):                      # K small & static; 128-lane aligned slices
        cos = jnp.maximum(cos, allcos[:, j * NC:(j + 1) * NC])
    cos_ref[...] = cos

    # inference: max over classes -> (similarity, label)  (first index on ties, like torch.max)
    sim = jnp.max(cos, axis=-1, keepdims=True)                       # (Bt, 1)
    sim_ref[...] = sim
    class_idx = lax.broadcasted_iota(jnp.int32, (Bt, NC), 1)
    lab_ref[...] = jnp.min(jnp.where(cos == sim, class_idx, NC), axis=-1, keepdims=True)

    # ArcMarginModelLoss -> per-sample cross-entropy (reduced to a mean in the wrapper)
    sine = jnp.sqrt(jnp.maximum(1.0 - cos * cos, 0.0))
    phi = cos * COS_M - sine * SIN_M
    if EASY_MARGIN:
        phi = jnp.where(cos > 0.0, phi, cos)
    else:
        phi = jnp.where(cos > TH, phi, cos - MM)
    one_hot = (class_idx == labels_ref[...]).astype(jnp.float32)      # (Bt, NC)
    logits = (one_hot * phi + (1.0 - one_hot) * cos) * FEATURE_SCALER

    mx = jnp.max(logits, axis=-1, keepdims=True)
    lse = mx + jnp.log(jnp.sum(jnp.exp(logits - mx), axis=-1, keepdims=True))   # (Bt, 1)
    tgt = jnp.sum(one_hot * logits, axis=-1, keepdims=True)                      # (Bt, 1)
    ce = lse - tgt
    if FOCAL_LOSS:
        pt = jnp.exp(-ce)
        ce = ((1.0 - pt) ** GAMMA) * ce
    ce_ref[...] = ce


def _round_up(n, m):
    return -(-n // m) * m


def _vmem_capacity_bytes():
    """Best-effort per-core VMEM capacity; conservative (v7x) fallback."""
    try:
        info = pltpu.get_tpu_info()
        for attr in ("vmem_capacity_bytes", "vmem_bytes", "vmem_size_bytes"):
            v = getattr(info, attr, None)
            if v:
                return int(v)
    except Exception:
        pass
    return 64 << 20


def metric_learning_forward(feat_nchw, labels, wneck, bneck, wsub, *, batch_tile=None):
    """Glue: lane-dense layout + batch tiling + pallas_call. feat_nchw: (B, C, H, W)."""
    B, C, H, W = feat_nchw.shape
    K, NC, E = wsub.shape
    HW = H * W

    # One transpose in the wrapper so channels land on the 128-lane axis inside the kernel
    # (feat block (Bt, HW, C) is lane-dense; contiguous 8 KiB rows instead of 64 B runs).
    feat = feat_nchw.reshape(B, C, HW).transpose(0, 2, 1)             # (B, HW, C)
    itemsize = jnp.dtype(feat.dtype).itemsize

    # ---- padded-footprint VMEM accounting (lane dim -> 128, sublane dim -> 8) ----
    lane = lambda n: _round_up(n, 128)
    sub = lambda n: _round_up(n, 8)
    vmem_cap = _vmem_capacity_bytes()
    small_vmem = vmem_cap <= (64 << 20)                               # v7x (64 MiB / TC)
    budget = (36 << 20) if small_vmem else (72 << 20)
    limit_cap = (40 << 20) if small_vmem else (80 << 20)

    # resident weights (assume Pallas double-buffers even constant-index blocks)
    weights_bytes = 2 * (sub(C) * lane(E) * 4
                         + sub(1) * lane(E) * 4
                         + sub(E) * lane(K * NC) * 4)

    # per-sample streamed bytes (double-buffered): feat + labels + the four outputs
    per_sample = 2 * (sub(HW) * lane(C) * itemsize                    # feat tile row
                      + lane(NC) * 4                                  # cos out
                      + lane(1) * 4                                   # labels in
                      + 3 * lane(1) * 4)                              # sim / lab / ce outs

    if batch_tile is None:
        headroom = 2 << 20
        bt = (budget - weights_bytes - headroom) // max(per_sample, 1)
        bt = max(8, (bt // 8) * 8)
        # keep >=2 grid tiles where B allows, so the "parallel" batch axis shards across
        # the two v7x TensorCores (no shared accumulator; per-sample CE reduced outside).
        half_b8 = max(8, _round_up(-(-B // 2), 8))
        batch_tile = min(bt, 256, half_b8)
    Bt = int(batch_tile)

    B_pad = _round_up(B, Bt)
    if B_pad != B:
        feat = jnp.pad(feat, ((0, B_pad - B), (0, 0), (0, 0)))
        labels = jnp.pad(labels, (0, B_pad - B))
    labels2d = labels.reshape(B_pad, 1).astype(jnp.int32)

    # Parameter-only prep hoisted out of the kernel:
    #   fold the 1/HW avg-pool scale into the neck weight,
    #   pre-normalize + pre-transpose sub-center weights (K, NC, E) -> (E, K*NC).
    wneck_s = wneck * (1.0 / HW)
    wsub_n = wsub * lax.rsqrt(jnp.sum(wsub * wsub, axis=-1, keepdims=True) + 1e-12)
    wsub_t = jnp.transpose(wsub_n, (2, 0, 1)).reshape(E, K * NC)
    bneck2 = bneck.reshape(1, E)

    n_tiles = B_pad // Bt

    in_specs = [
        pl.BlockSpec((Bt, HW, C), lambda i: (i, 0, 0)),   # streamed, lane-dense feature tiles
        pl.BlockSpec((Bt, 1), lambda i: (i, 0)),          # labels per tile
        pl.BlockSpec((C, E), lambda i: (0, 0)),           # weights: constant block index ->
        pl.BlockSpec((1, E), lambda i: (0, 0)),           #   VMEM-resident across tiles
        pl.BlockSpec((E, K * NC), lambda i: (0, 0)),
    ]
    out_shapes = (
        jax.ShapeDtypeStruct((B_pad, NC), jnp.float32),   # classwise_cos_similarities
        jax.ShapeDtypeStruct((B_pad, 1), jnp.float32),    # similarity
        jax.ShapeDtypeStruct((B_pad, 1), jnp.int32),      # label
        jax.ShapeDtypeStruct((B_pad, 1), jnp.float32),    # per-sample CE (reduced below)
    )
    out_specs = (
        pl.BlockSpec((Bt, NC), lambda i: (i, 0)),
        pl.BlockSpec((Bt, 1), lambda i: (i, 0)),
        pl.BlockSpec((Bt, 1), lambda i: (i, 0)),
        pl.BlockSpec((Bt, 1), lambda i: (i, 0)),
    )

    # honest scoped-VMEM request from padded block shapes (inputs+outputs double-buffered)
    vmem_limit = Bt * per_sample + weights_bytes + (2 << 20)
    vmem_limit = int(min(max(vmem_limit, 16 << 20), limit_cap))

    cos, sim, lab, ce = pl.pallas_call(
        metric_kernel,
        out_shape=out_shapes,
        grid=(n_tiles,),
        in_specs=in_specs,
        out_specs=out_specs,
        compiler_params=pltpu.CompilerParams(
            dimension_semantics=("parallel",),            # safe: no shared accumulator
            vmem_limit_bytes=vmem_limit),
    )(feat, labels2d, wneck_s, bneck2, wsub_t)

    # Loss mean over the *true* batch (padded rows sliced away).
    loss = jnp.sum(ce[:B, 0]) / B
    return {
        "loss_arc_margin": loss,
        "classwise_cos_similarities": cos[:B],
        "similarity": sim[:B, 0],
        "label": lab[:B, 0],
    }


def reference_forward(feat_nchw, labels, wneck, bneck, wsub):
    """Pure-JAX reference replicating the PyTorch forward semantics."""
    pooled = feat_nchw.mean(axis=(2, 3))                                    # avgpool + flatten
    emb = pooled @ wneck + bneck
    emb = emb / jnp.linalg.norm(emb, axis=-1, keepdims=True)
    wn = wsub / jnp.linalg.norm(wsub, axis=-1, keepdims=True)               # (K, NC, E)
    cos = jnp.einsum("be,kce->bck", emb, wn).max(axis=-1)                   # (B, NC)
    sine = jnp.sqrt(jnp.clip(1.0 - cos * cos, 0.0, None))
    phi = cos * COS_M - sine * SIN_M
    phi = jnp.where(cos > 0.0, phi, cos) if EASY_MARGIN else jnp.where(cos > TH, phi, cos - MM)
    oh = jax.nn.one_hot(labels, cos.shape[1], dtype=jnp.float32)
    logits = (oh * phi + (1.0 - oh) * cos) * FEATURE_SCALER
    ce = -jnp.sum(oh * jax.nn.log_softmax(logits, axis=-1), axis=-1)
    if FOCAL_LOSS:
        pt = jnp.exp(-ce)
        ce = ((1.0 - pt) ** GAMMA) * ce
    return cos, cos.max(-1), cos.argmax(-1), ce.mean()


if __name__ == "__main__":
    key = jax.random.PRNGKey(0)
    k_feat, k_lab, k_neck, k_sub = jax.random.split(key, 4)

    B, H, W = 2, 4, 4
    # synthetic backbone output features['res5'] (NCHW, as PyTorch would produce)
    feat_nchw = jax.random.normal(k_feat, (B, BACKBONE_DIM, H, W), jnp.float32)
    labels = jax.random.randint(k_lab, (B,), 0, NUM_CLASSES, jnp.int32)

    # deterministic parameter init (xavier_uniform, like the PyTorch module's layers)
    lim_neck = math.sqrt(6.0 / (BACKBONE_DIM + EMBED_DIM))
    wneck = jax.random.uniform(k_neck, (BACKBONE_DIM, EMBED_DIM), jnp.float32,
                               -lim_neck, lim_neck)
    bneck = jnp.zeros((EMBED_DIM,), jnp.float32)
    lim_sub = math.sqrt(6.0 / (EMBED_DIM + NUM_CLASSES * SUBCENTRES_K))
    wsub_flat = jax.random.uniform(k_sub, (NUM_CLASSES * SUBCENTRES_K, EMBED_DIM),
                                   jnp.float32, -lim_sub, lim_sub)
    # PyTorch view(-1, num_classes, k) ordering: row = class * k + j  ->  (k, class, E)
    wsub = wsub_flat.reshape(NUM_CLASSES, SUBCENTRES_K, EMBED_DIM).transpose(1, 0, 2)

    out = jax.jit(metric_learning_forward)(feat_nchw, labels, wneck, bneck, wsub)
    jax.block_until_ready(out)

    ref_cos, ref_sim, ref_lab, ref_loss = reference_forward(
        feat_nchw, labels, wneck, bneck, wsub)
    assert jnp.allclose(out["classwise_cos_similarities"], ref_cos, atol=1e-4, rtol=1e-4)
    assert jnp.allclose(out["similarity"], ref_sim, atol=1e-4, rtol=1e-4)
    assert jnp.array_equal(out["label"], ref_lab.astype(jnp.int32))
    assert jnp.allclose(out["loss_arc_margin"], ref_loss, atol=1e-3, rtol=1e-3)

    print("KERNEL_OK")
</pallas_src>

<mosaic_0001>
module attributes {stable_mosaic.version = 11 : i64} {
  func.func @metric_kernel(%arg0: i32, %arg1: memref<8x16x2048xf32, #tpu.memory_space<vmem>>, %arg2: memref<8x1xi32, #tpu.memory_space<vmem>>, %arg3: memref<2048x128xf32, #tpu.memory_space<vmem>>, %arg4: memref<1x128xf32, #tpu.memory_space<vmem>>, %arg5: memref<128x384xf32, #tpu.memory_space<vmem>>, %arg6: memref<8x128xf32, #tpu.memory_space<vmem>>, %arg7: memref<8x1xf32, #tpu.memory_space<vmem>>, %arg8: memref<8x1xi32, #tpu.memory_space<vmem>>, %arg9: memref<8x1xf32, #tpu.memory_space<vmem>>) attributes {dimension_semantics = [#tpu.dimension_semantics<parallel>], iteration_bounds = array<i64: 1>, scalar_prefetch = 0 : i64, scratch_operands = 0 : i64, tpu.core_type = #tpu.core_type<tc>, window_params = [{transform_indices = @transform_0, window_bounds = array<i64: 8, 16, 2048>}, {transform_indices = @transform_1, window_bounds = array<i64: 8, 1>}, {pipeline_mode = #tpu.pipeline_mode<synchronous>, transform_indices = @transform_2, window_bounds = array<i64: 2048, 128>}, {pipeline_mode = #tpu.pipeline_mode<synchronous>, transform_indices = @transform_3, window_bounds = array<i64: 1, 128>}, {pipeline_mode = #tpu.pipeline_mode<synchronous>, transform_indices = @transform_4, window_bounds = array<i64: 128, 384>}, {transform_indices = @transform_5, window_bounds = array<i64: 8, 128>}, {transform_indices = @transform_6, window_bounds = array<i64: 8, 1>}, {transform_indices = @transform_7, window_bounds = array<i64: 8, 1>}, {transform_indices = @transform_8, window_bounds = array<i64: 8, 1>}]} {
    %c0 = arith.constant 0 : index
    %c0_0 = arith.constant 0 : index
    %c0_1 = arith.constant 0 : index
    %0 = vector.load %arg1[%c0, %c0_0, %c0_1] : memref<8x16x2048xf32, #tpu.memory_space<vmem>>, vector<8x16x2048xf32>
    %cst = arith.constant dense<0.000000e+00> : vector<8x2048xf32>
    %1 = vector.multi_reduction <add>, %0, %cst [1] : vector<8x16x2048xf32> to vector<8x2048xf32>
    %c0_2 = arith.constant 0 : index
    %c0_3 = arith.constant 0 : index
    %2 = vector.load %arg3[%c0_2, %c0_3] : memref<2048x128xf32, #tpu.memory_space<vmem>>, vector<2048x128xf32>
    %cst_4 = arith.constant dense<0.000000e+00> : vector<8x128xf32>
    %3 = tpu.matmul %1, %2, %cst_4 {dimension_numbers = #tpu.dot_dimension_numbers<[1], [0], [0], [1], [0, 0, 1, 1], [], []>} : vector<8x2048xf32>, vector<2048x128xf32>, vector<8x128xf32> -> vector<8x128xf32>
    %c0_5 = arith.constant 0 : index
    %c0_6 = arith.constant 0 : index
    %4 = vector.load %arg4[%c0_5, %c0_6] : memref<1x128xf32, #tpu.memory_space<vmem>>, vector<1x128xf32>
    %5 = vector.broadcast %4 : vector<1x128xf32> to vector<8x128xf32>
    %6 = arith.addf %3, %5 : vector<8x128xf32>
    %7 = arith.mulf %6, %6 : vector<8x128xf32>
    %cst_7 = arith.constant dense<0.000000e+00> : vector<8xf32>
    %8 = vector.multi_reduction <add>, %7, %cst_7 [1] : vector<8x128xf32> to vector<8xf32>
    %9 = vector.shape_cast %8 : vector<8xf32> to vector<8x1xf32>
    %cst_8 = arith.constant 9.99999996E-13 : f32
    %10 = vector.broadcast %cst_8 : f32 to vector<8x1xf32>
    %11 = arith.addf %9, %10 : vector<8x1xf32>
    %12 = math.rsqrt %11 : vector<8x1xf32>
    %13 = vector.broadcast %12 : vector<8x1xf32> to vector<8x128xf32>
    %14 = arith.mulf %6, %13 : vector<8x128xf32>
    %c0_9 = arith.constant 0 : index
    %c0_10 = arith.constant 0 : index
    %15 = vector.load %arg5[%c0_9, %c0_10] : memref<128x384xf32, #tpu.memory_space<vmem>>, vector<128x384xf32>
    %cst_11 = arith.constant dense<0.000000e+00> : vector<8x384xf32>
    %16 = tpu.matmul %14, %15, %cst_11 {dimension_numbers = #tpu.dot_dimension_numbers<[1], [0], [0], [1], [0, 0, 1, 1], [], []>} : vector<8x128xf32>, vector<128x384xf32>, vector<8x384xf32> -> vector<8x384xf32>
    %17 = vector.extract_strided_slice %16 {offsets = [0, 0], sizes = [8, 128], strides = [1, 1]} : vector<8x384xf32> to vector<8x128xf32>
    %18 = vector.extract_strided_slice %16 {offsets = [0, 128], sizes = [8, 128], strides = [1, 1]} : vector<8x384xf32> to vector<8x128xf32>
    %19 = arith.maximumf %17, %18 : vector<8x128xf32>
    %20 = vector.extract_strided_slice %16 {offsets = [0, 256], sizes = [8, 128], strides = [1, 1]} : vector<8x384xf32> to vector<8x128xf32>
    %21 = arith.maximumf %19, %20 : vector<8x128xf32>
    %c0_12 = arith.constant 0 : index
    %c0_13 = arith.constant 0 : index
    %22 = vector.load %arg6[%c0_12, %c0_13] : memref<8x128xf32, #tpu.memory_space<vmem>>, vector<8x128xf32>
    tpu.vector_store %arg6[%c0_12, %c0_13], %21 {strides = array<i32>} : memref<8x128xf32, #tpu.memory_space<vmem>>, vector<8x128xf32>,
    %cst_14 = arith.constant dense<0xFF800000> : vector<8xf32>
    %23 = vector.multi_reduction <maximumf>, %21, %cst_14 [1] : vector<8x128xf32> to vector<8xf32>
    %24 = vector.shape_cast %23 : vector<8xf32> to vector<8x1xf32>
    %c0_15 = arith.constant 0 : index
    %c0_16 = arith.constant 0 : index
    %25 = vector.load %arg7[%c0_15, %c0_16] : memref<8x1xf32, #tpu.memory_space<vmem>>, vector<8x1xf32>
    tpu.vector_store %arg7[%c0_15, %c0_16], %24 {strides = array<i32>} : memref<8x1xf32, #tpu.memory_space<vmem>>, vector<8x1xf32>,
    %26 = tpu.iota {dimensions = array<i32: 1>} : vector<8x128xi32>
    %27 = vector.broadcast %24 : vector<8x1xf32> to vector<8x128xf32>
    %28 = arith.cmpf oeq, %21, %27 : vector<8x128xf32>
    %c128_i32 = arith.constant 128 : i32
    %29 = vector.broadcast %c128_i32 : i32 to vector<8x128xi32>
    %30 = arith.select %28, %26, %29 : vector<8x128xi1>, vector<8x128xi32>
    %cst_17 = arith.constant dense<2147483647> : vector<8xi32>
    %31 = vector.multi_reduction <minsi>, %30, %cst_17 [1] : vector<8x128xi32> to vector<8xi32>
    %32 = vector.shape_cast %31 : vector<8xi32> to vector<8x1xi32>
    %c0_18 = arith.constant 0 : index
    %c0_19 = arith.constant 0 : index
    %33 = vector.load %arg8[%c0_18, %c0_19] : memref<8x1xi32, #tpu.memory_space<vmem>>, vector<8x1xi32>
    tpu.vector_store %arg8[%c0_18, %c0_19], %32 {strides = array<i32>} : memref<8x1xi32, #tpu.memory_space<vmem>>, vector<8x1xi32>,
    %34 = arith.mulf %21, %21 : vector<8x128xf32>
    %cst_20 = arith.constant 1.000000e+00 : f32
    %35 = vector.broadcast %cst_20 : f32 to vector<8x128xf32>
    %36 = arith.subf %35, %34 : vector<8x128xf32>
    %cst_21 = arith.constant 0.000000e+00 : f32
    %37 = vector.broadcast %cst_21 : f32 to vector<8x128xf32>
    %38 = arith.maximumf %36, %37 : vector<8x128xf32>
    %39 = math.sqrt %38 : vector<8x128xf32>
    %cst_22 = arith.constant 0.87758255 : f32
    %40 = vector.broadcast %cst_22 : f32 to vector<8x128xf32>
    %41 = arith.mulf %21, %40 : vector<8x128xf32>
    %cst_23 = arith.constant 0.47942555 : f32
    %42 = vector.broadcast %cst_23 : f32 to vector<8x128xf32>
    %43 = arith.mulf %39, %42 : vector<8x128xf32>
    %44 = arith.subf %41, %43 : vector<8x128xf32>
    %cst_24 = arith.constant -0.87758255 : f32
    %45 = vector.broadcast %cst_24 : f32 to vector<8x128xf32>
    %46 = arith.cmpf ogt, %21, %45 : vector<8x128xf32>
    %cst_25 = arith.constant 0.239712775 : f32
    %47 = vector.broadcast %cst_25 : f32 to vector<8x128xf32>
    %48 = arith.subf %21, %47 : vector<8x128xf32>
    %49 = arith.select %46, %44, %48 : vector<8x128xi1>, vector<8x128xf32>
    %c0_26 = arith.constant 0 : index
    %c0_27 = arith.constant 0 : index
    %50 = vector.load %arg2[%c0_26, %c0_27] : memref<8x1xi32, #tpu.memory_space<vmem>>, vector<8x1xi32>
    %51 = vector.broadcast %50 : vector<8x1xi32> to vector<8x128xi32>
    %52 = arith.cmpi eq, %26, %51 : vector<8x128xi32>
    %53 = arith.extui %52 : vector<8x128xi1> to vector<8x128xi32>
    %54 = arith.sitofp %53 : vector<8x128xi32> to vector<8x128xf32>
    %55 = arith.mulf %54, %49 : vector<8x128xf32>
    %cst_28 = arith.constant 1.000000e+00 : f32
    %56 = vector.broadcast %cst_28 : f32 to vector<8x128xf32>
    %57 = arith.subf %56, %54 : vector<8x128xf32>
    %58 = arith.mulf %57, %21 : vector<8x128xf32>
    %59 = arith.addf %55, %58 : vector<8x128xf32>
    %cst_29 = arith.constant 3.000000e+01 : f32
    %60 = vector.broadcast %cst_29 : f32 to vector<8x128xf32>
    %61 = arith.mulf %59, %60 : vector<8x128xf32>
    %cst_30 = arith.constant dense<0xFF800000> : vector<8xf32>
    %62 = vector.multi_reduction <maximumf>, %61, %cst_30 [1] : vector<8x128xf32> to vector<8xf32>
    %63 = vector.shape_cast %62 : vector<8xf32> to vector<8x1xf32>
    %64 = vector.broadcast %63 : vector<8x1xf32> to vector<8x128xf32>
    %65 = arith.subf %61, %64 : vector<8x128xf32>
    %66 = math.exp %65 : vector<8x128xf32>
    %cst_31 = arith.constant dense<0.000000e+00> : vector<8xf32>
    %67 = vector.multi_reduction <add>, %66, %cst_31 [1] : vector<8x128xf32> to vector<8xf32>
    %68 = vector.shape_cast %67 : vector<8xf32> to vector<8x1xf32>
    %69 = math.log %68 : vector<8x1xf32>
    %70 = arith.addf %63, %69 : vector<8x1xf32>
    %71 = arith.mulf %54, %61 : vector<8x128xf32>
    %cst_32 = arith.constant dense<0.000000e+00> : vector<8xf32>
    %72 = vector.multi_reduction <add>, %71, %cst_32 [1] : vector<8x128xf32> to vector<8xf32>
    %73 = vector.shape_cast %72 : vector<8xf32> to vector<8x1xf32>
    %74 = arith.subf %70, %73 : vector<8x1xf32>
    %c0_33 = arith.constant 0 : index
    %c0_34 = arith.constant 0 : index
    %75 = vector.load %arg9[%c0_33, %c0_34] : memref<8x1xf32, #tpu.memory_space<vmem>>, vector<8x1xf32>
    tpu.vector_store %arg9[%c0_33, %c0_34], %74 {strides = array<i32>} : memref<8x1xf32, #tpu.memory_space<vmem>>, vector<8x1xf32>,
    return
  }
  func.func @transform_0(%arg0: i32) -> (i32, i32, i32) {
    %c0_i32 = arith.constant 0 : i32
    %c0_i32_0 = arith.constant 0 : i32
    %c0_i32_1 = arith.constant 0 : i32
    return %arg0, %c0_i32, %c0_i32_0 : i32, i32, i32
  }
  func.func @transform_1(%arg0: i32) -> (i32, i32) {
    %c0_i32 = arith.constant 0 : i32
    %c0_i32_0 = arith.constant 0 : i32
    return %arg0, %c0_i32 : i32, i32
  }
  func.func @transform_2(%arg0: i32) -> (i32, i32) {
    %c0_i32 = arith.constant 0 : i32
    %c0_i32_0 = arith.constant 0 : i32
    %c0_i32_1 = arith.constant 0 : i32
    return %c0_i32, %c0_i32_0 : i32, i32
  }
  func.func @transform_3(%arg0: i32) -> (i32, i32) {
    %c0_i32 = arith.constant 0 : i32
    %c0_i32_0 = arith.constant 0 : i32
    %c0_i32_1 = arith.constant 0 : i32
    return %c0_i32, %c0_i32_0 : i32, i32
  }
  func.func @transform_4(%arg0: i32) -> (i32, i32) {
    %c0_i32 = arith.constant 0 : i32
    %c0_i32_0 = arith.constant 0 : i32
    %c0_i32_1 = arith.constant 0 : i32
    return %c0_i32, %c0_i32_0 : i32, i32
  }
  func.func @transform_5(%arg0: i32) -> (i32, i32) {
    %c0_i32 = arith.constant 0 : i32
    %c0_i32_0 = arith.constant 0 : i32
    return %arg0, %c0_i32 : i32, i32
  }
  func.func @transform_6(%arg0: i32) -> (i32, i32) {
    %c0_i32 = arith.constant 0 : i32
    %c0_i32_0 = arith.constant 0 : i32
    return %arg0, %c0_i32 : i32, i32
  }
  func.func @transform_7(%arg0: i32) -> (i32, i32) {
    %c0_i32 = arith.constant 0 : i32
    %c0_i32_0 = arith.constant 0 : i32
    return %arg0, %c0_i32 : i32, i32
  }
  func.func @transform_8(%arg0: i32) -> (i32, i32) {
    %c0_i32 = arith.constant 0 : i32
    %c0_i32_0 = arith.constant 0 : i32
    return %arg0, %c0_i32 : i32, i32
  }
}

</mosaic_0001>

<llo_original>
// kernel: metric_learning_forward.1
$region0: #{metric_learning_forward.1}
  #allocation0 [shape = 'u32[]', space=smem, size = 0x4, offset = 0x4, fixed_abs, tag = 'smem constant byte address 0x4 - core index']
  #allocation1 [shape = 'u32[144,128]{1,0:T(1,128)}', space=vmem, size = 0x12000, scoped, tag = 'internal scratch']
  %s0 = inlined_call_operand.vmem [shape: f32[8,16,2048], index: 0, kind: input, shape index: {}]
  %s1 = inlined_call_operand.vmem [shape: s32[8,1], index: 1, kind: input, shape index: {}]
  %s2 = inlined_call_operand.vmem [shape: f32[2048,128], index: 2, kind: input, shape index: {}]
  %s3 = inlined_call_operand.vmem [shape: f32[1,128], index: 3, kind: input, shape index: {}]
  %s4 = inlined_call_operand.vmem [shape: f32[128,384], index: 4, kind: input, shape index: {}]
  %s5 = inlined_call_operand.vmem [shape: f32[8,128], index: 5, kind: output, shape index: {0}]
  %s6 = inlined_call_operand.vmem [shape: f32[8,1], index: 6, kind: output, shape index: {1}]
  %s7 = inlined_call_operand.vmem [shape: s32[8,1], index: 7, kind: output, shape index: {2}]
  %s8 = inlined_call_operand.vmem [shape: f32[8,1], index: 8, kind: output, shape index: {3}]
  %9 = xla_tuple %s5, %s6, %s7, %s8
  %s10 = sld [smem:[#allocation0]]
  $region54: #{metric_learning_forward.1} parent=0
    _
  %s12 = ssub.s32 1, %s10
  %s13 = scalar_select 0, %s12, %s10
  // Predicated region
  $region2: #{metric_learning_forward.1} parent=0 // pred_check
    _
  $region3: #{metric_learning_forward.1} parent=0 // pred_check_branch
    %15 = sbr.rel (0) target = $region5
  $region4: #{metric_learning_forward.1} parent=0 // pred_region
    _
  $region5: #{metric_learning_forward.1} parent=0 // pred_fallthru
    _
  // Predicated region
  $region6: #{metric_learning_forward.1} parent=0 // pred_check
    _
  $region7: #{metric_learning_forward.1} parent=0 // pred_check_branch
    %17 = sbr.rel (0) target = $region9
  $region8: #{metric_learning_forward.1} parent=0 // pred_region
    _
  $region9: #{metric_learning_forward.1} parent=0 // pred_fallthru
    _
  // Predicated region
  $region10: #{metric_learning_forward.1} parent=0 // pred_check
    _
  $region11: #{metric_learning_forward.1} parent=0 // pred_check_branch
    %19 = sbr.rel (0) target = $region13
  $region12: #{metric_learning_forward.1} parent=0 // pred_region
    _
  $region13: #{metric_learning_forward.1} parent=0 // pred_fallthru
    _
  // Predicated region
  $region14: #{metric_learning_forward.1} parent=0 // pred_check
    _
  $region15: #{metric_learning_forward.1} parent=0 // pred_check_branch
    %21 = sbr.rel (0) target = $region17
  $region16: #{metric_learning_forward.1} parent=0 // pred_region
    _
  $region17: #{metric_learning_forward.1} parent=0 // pred_fallthru
    _
  // Predicated region
  $region18: #{metric_learning_forward.1} parent=0 // pred_check
    _
  $region19: #{metric_learning_forward.1} parent=0 // pred_check_branch
    %23 = sbr.rel (0) target = $region21
  $region20: #{metric_learning_forward.1} parent=0 // pred_region
    _
  $region21: #{metric_learning_forward.1} parent=0 // pred_fallthru
    _
  %v24 = vld [vmem:[%s0] sm:$0xff]
  %v25 = vld [vmem:[%s0 + $0x8] sm:$0xff]
  %v26 = vld [vmem:[%s0 + $0x10] sm:$0xff]
  %v27 = vld [vmem:[%s0 + $0x18] sm:$0xff]
  %v28 = vld [vmem:[%s0 + $0x20] sm:$0xff]
  %v29 = vld [vmem:[%s0 + $0x28] sm:$0xff]
  %v30 = vld [vmem:[%s0 + $0x30] sm:$0xff]
  %v31 = vld [vmem:[%s0 + $0x38] sm:$0xff]
  %v32 = vld [vmem:[%s0 + $0x40] sm:$0xff]
  %v33 = vld [vmem:[%s0 + $0x48] sm:$0xff]
  %v34 = vld [vmem:[%s0 + $0x50] sm:$0xff]
  %v35 = vld [vmem:[%s0 + $0x58] sm:$0xff]
  %v36 = vld [vmem:[%s0 + $0x60] sm:$0xff]
  %v37 = vld [vmem:[%s0 + $0x68] sm:$0xff]
  %v38 = vld [vmem:[%s0 + $0x70] sm:$0xff]
  %v39 = vld [vmem:[%s0 + $0x78] sm:$0xff]
  %v40 = vld [vmem:[%s0 + $0x80] sm:$0xff]
  %v41 = vld [vmem:[%s0 + $0x88] sm:$0xff]
  %v42 = vld [vmem:[%s0 + $0x90] sm:$0xff]
  %v43 = vld [vmem:[%s0 + $0x98] sm:$0xff]
  %v44 = vld [vmem:[%s0 + $0xa0] sm:$0xff]
  %v45 = vld [vmem:[%s0 + $0xa8] sm:$0xff]
  %v46 = vld [vmem:[%s0 + $0xb0] sm:$0xff]
  %v47 = vld [vmem:[%s0 + $0xb8] sm:$0xff]
  %v48 = vld [vmem:[%s0 + $0xc0] sm:$0xff]
  %v49 = vld [vmem:[%s0 + $0xc8] sm:$0xff]
  %v50 = vld [vmem:[%s0 + $0xd0] sm:$0xff]
  %v51 = vld [vmem:[%s0 + $0xd8] sm:$0xff]
  %v52 = vld [vmem:[%s0 + $0xe0] sm:$0xff]
  %v53 = vld [vmem:[%s0 + $0xe8] sm:$0xff]
  %v54 = vld [vmem:[%s0 + $0xf0] sm:$0xff]
  %v55 = vld [vmem:[%s0 + $0xf8] sm:$0xff]
  %v56 = vld [vmem:[%s0 + $0x100] sm:$0xff]
  %v57 = vld [vmem:[%s0 + $0x108] sm:$0xff]
  %v58 = vld [vmem:[%s0 + $0x110] sm:$0xff]
  %v59 = vld [vmem:[%s0 + $0x118] sm:$0xff]
  %v60 = vld [vmem:[%s0 + $0x120] sm:$0xff]
  %v61 = vld [vmem:[%s0 + $0x128] sm:$0xff]
  %v62 = vld [vmem:[%s0 + $0x130] sm:$0xff]
  %v63 = vld [vmem:[%s0 + $0x138] sm:$0xff]
  %v64 = vld [vmem:[%s0 + $0x140] sm:$0xff]
  %v65 = vld [vmem:[%s0 + $0x148] sm:$0xff]
  %v66 = vld [vmem:[%s0 + $0x150] sm:$0xff]
  %v67 = vld [vmem:[%s0 + $0x158] sm:$0xff]
  %v68 = vld [vmem:[%s0 + $0x160] sm:$0xff]
  %v69 = vld [vmem:[%s0 + $0x168] sm:$0xff]
  %v70 = vld [vmem:[%s0 + $0x170] sm:$0xff]
  %v71 = vld [vmem:[%s0 + $0x178] sm:$0xff]
  %v72 = vld [vmem:[%s0 + $0x180] sm:$0xff]
  %v73 = vld [vmem:[%s0 + $0x188] sm:$0xff]
  %v74 = vld [vmem:[%s0 + $0x190] sm:$0xff]
  %v75 = vld [vmem:[%s0 + $0x198] sm:$0xff]
  %v76 = vld [vmem:[%s0 + $0x1a0] sm:$0xff]
  %v77 = vld [vmem:[%s0 + $0x1a8] sm:$0xff]
  %v78 = vld [vmem:[%s0 + $0x1b0] sm:$0xff]
  %v79 = vld [vmem:[%s0 + $0x1b8] sm:$0xff]
  %v80 = vld [vmem:[%s0 + $0x1c0] sm:$0xff]
  %v81 = vld [vmem:[%s0 + $0x1c8] sm:$0xff]
  %v82 = vld [vmem:[%s0 + $0x1d0] sm:$0xff]
  %v83 = vld [vmem:[%s0 + $0x1d8] sm:$0xff]
  %v84 = vld [vmem:[%s0 + $0x1e0] sm:$0xff]
  %v85 = vld [vmem:[%s0 + $0x1e8] sm:$0xff]
  %v86 = vld [vmem:[%s0 + $0x1f0] sm:$0xff]
  %v87 = vld [vmem:[%s0 + $0x1f8] sm:$0xff]
  %v88 = vld [vmem:[%s0 + $0x200] sm:$0xff]
  %v89 = vld [vmem:[%s0 + $0x208] sm:$0xff]
  %v90 = vld [vmem:[%s0 + $0x210] sm:$0xff]
  %v91 = vld [vmem:[%s0 + $0x218] sm:$0xff]
  %v92 = vld [vmem:[%s0 + $0x220] sm:$0xff]
  %v93 = vld [vmem:[%s0 + $0x228] sm:$0xff]
  %v94 = vld [vmem:[%s0 + $0x230] sm:$0xff]
  %v95 = vld [vmem:[%s0 + $0x238] sm:$0xff]
  %v96 = vld [vmem:[%s0 + $0x240] sm:$0xff]
  %v97 = vld [vmem:[%s0 + $0x248] sm:$0xff]
  %v98 = vld [vmem:[%s0 + $0x250] sm:$0xff]
  %v99 = vld [vmem:[%s0 + $0x258] sm:$0xff]
  %v100 = vld [vmem:[%s0 + $0x260] sm:$0xff]
  %v101 = vld [vmem:[%s0 + $0x268] sm:$0xff]
  %v102 = vld [vmem:[%s0 + $0x270] sm:$0xff]
  %v103 = vld [vmem:[%s0 + $0x278] sm:$0xff]
  %v104 = vld [vmem:[%s0 + $0x280] sm:$0xff]
  %v105 = vld [vmem:[%s0 + $0x288] sm:$0xff]
  %v106 = vld [vmem:[%s0 + $0x290] sm:$0xff]
  %v107 = vld [vmem:[%s0 + $0x298] sm:$0xff]
  %v108 = vld [vmem:[%s0 + $0x2a0] sm:$0xff]
  %v109 = vld [vmem:[%s0 + $0x2a8] sm:$0xff]
  %v110 = vld [vmem:[%s0 + $0x2b0] sm:$0xff]
  %v111 = vld [vmem:[%s0 + $0x2b8] sm:$0xff]
  %v112 = vld [vmem:[%s0 + $0x2c0] sm:$0xff]
  %v113 = vld [vmem:[%s0 + $0x2c8] sm:$0xff]
  %v114 = vld [vmem:[%s0 + $0x2d0] sm:$0xff]
  %v115 = vld [vmem:[%s0 + $0x2d8] sm:$0xff]
  %v116 = vld [vmem:[%s0 + $0x2e0] sm:$0xff]
  %v117 = vld [vmem:[%s0 + $0x2e8] sm:$0xff]
  %v118 = vld [vmem:[%s0 + $0x2f0] sm:$0xff]
  %v119 = vld [vmem:[%s0 + $0x2f8] sm:$0xff]
  %v120 = vld [vmem:[%s0 + $0x300] sm:$0xff]
  %v121 = vld [vmem:[%s0 + $0x308] sm:$0xff]
  %v122 = vld [vmem:[%s0 + $0x310] sm:$0xff]
  %v123 = vld [vmem:[%s0 + $0x318] sm:$0xff]
  %v124 = vld [vmem:[%s0 + $0x320] sm:$0xff]
  %v125 = vld [vmem:[%s0 + $0x328] sm:$0xff]
  %v126 = vld [vmem:[%s0 + $0x330] sm:$0xff]
  %v127 = vld [vmem:[%s0 + $0x338] sm:$0xff]
  %v128 = vld [vmem:[%s0 + $0x340] sm:$0xff]
  %v129 = vld [vmem:[%s0 + $0x348] sm:$0xff]
  %v130 = vld [vmem:[%s0 + $0x350] sm:$0xff]
  %v131 = vld [vmem:[%s0 + $0x358] sm:$0xff]
  %v132 = vld [vmem:[%s0 + $0x360] sm:$0xff]
  %v133 = vld [vmem:[%s0 + $0x368] sm:$0xff]
  %v134 = vld [vmem:[%s0 + $0x370] sm:$0xff]
  %v135 = vld [vmem:[%s0 + $0x378] sm:$0xff]
  %v136 = vld [vmem:[%s0 + $0x380] sm:$0xff]
  %v137 = vld [vmem:[%s0 + $0x388] sm:$0xff]
  %v138 = vld [vmem:[%s0 + $0x390] sm:$0xff]
  %v139 = vld [vmem:[%s0 + $0x398] sm:$0xff]
  %v140 = vld [vmem:[%s0 + $0x3a0] sm:$0xff]
  %v141 = vld [vmem:[%s0 + $0x3a8] sm:$0xff]
  %v142 = vld [vmem:[%s0 + $0x3b0] sm:$0xff]
  %v143 = vld [vmem:[%s0 + $0x3b8] sm:$0xff]
  %v144 = vld [vmem:[%s0 + $0x3c0] sm:$0xff]
  %v145 = vld [vmem:[%s0 + $0x3c8] sm:$0xff]
  %v146 = vld [vmem:[%s0 + $0x3d0] sm:$0xff]
  %v147 = vld [vmem:[%s0 + $0x3d8] sm:$0xff]
  %v148 = vld [vmem:[%s0 + $0x3e0] sm:$0xff]
  %v149 = vld [vmem:[%s0 + $0x3e8] sm:$0xff]
  %v150 = vld [vmem:[%s0 + $0x3f0] sm:$0xff]
  %v151 = vld [vmem:[%s0 + $0x3f8] sm:$0xff]
  %v152 = vld [vmem:[%s0 + $0x400] sm:$0xff]
  %v153 = vld [vmem:[%s0 + $0x408] sm:$0xff]
  %v154 = vld [vmem:[%s0 + $0x410] sm:$0xff]
  %v155 = vld [vmem:[%s0 + $0x418] sm:$0xff]
  %v156 = vld [vmem:[%s0 + $0x420] sm:$0xff]
  %v157 = vld [vmem:[%s0 + $0x428] sm:$0xff]
  %v158 = vld [vmem:[%s0 + $0x430] sm:$0xff]
  %v159 = vld [vmem:[%s0 + $0x438] sm:$0xff]
  %v160 = vld [vmem:[%s0 + $0x440] sm:$0xff]
  %v161 = vld [vmem:[%s0 + $0x448] sm:$0xff]
  %v162 = vld [vmem:[%s0 + $0x450] sm:$0xff]
  %v163 = vld [vmem:[%s0 + $0x458] sm:$0xff]
  %v164 = vld [vmem:[%s0 + $0x460] sm:$0xff]
  %v165 = vld [vmem:[%s0 + $0x468] sm:$0xff]
  %v166 = vld [vmem:[%s0 + $0x470] sm:$0xff]
  %v167 = vld [vmem:[%s0 + $0x478] sm:$0xff]
  %v168 = vld [vmem:[%s0 + $0x480] sm:$0xff]
  %v169 = vld [vmem:[%s0 + $0x488] sm:$0xff]
  %v170 = vld [vmem:[%s0 + $0x490] sm:$0xff]
  %v171 = vld [vmem:[%s0 + $0x498] sm:$0xff]
  %v172 = vld [vmem:[%s0 + $0x4a0] sm:$0xff]
  %v173 = vld [vmem:[%s0 + $0x4a8] sm:$0xff]
  %v174 = vld [vmem:[%s0 + $0x4b0] sm:$0xff]
  %v175 = vld [vmem:[%s0 + $0x4b8] sm:$0xff]
  %v176 = vld [vmem:[%s0 + $0x4c0] sm:$0xff]
  %v177 = vld [vmem:[%s0 + $0x4c8] sm:$0xff]
  %v178 = vld [vmem:[%s0 + $0x4d0] sm:$0xff]
  %v179 = vld [vmem:[%s0 + $0x4d8] sm:$0xff]
  %v180 = vld [vmem:[%s0 + $0x4e0] sm:$0xff]
  %v181 = vld [vmem:[%s0 + $0x4e8] sm:$0xff]
  %v182 = vld [vmem:[%s0 + $0x4f0] sm:$0xff]
  %v183 = vld [vmem:[%s0 + $0x4f8] sm:$0xff]
  %v184 = vld [vmem:[%s0 + $0x500] sm:$0xff]
  %v185 = vld [vmem:[%s0 + $0x508] sm:$0xff]
  %v186 = vld [vmem:[%s0 + $0x510] sm:$0xff]
  %v187 = vld [vmem:[%s0 + $0x518] sm:$0xff]
  %v188 = vld [vmem:[%s0 + $0x520] sm:$0xff]
  %v189 = vld [vmem:[%s0 + $0x528] sm:$0xff]
  %v190 = vld [vmem:[%s0 + $0x530] sm:$0xff]
  %v191 = vld [vmem:[%s0 + $0x538] sm:$0xff]
  %v192 = vld [vmem:[%s0 + $0x540] sm:$0xff]
  %v193 = vld [vmem:[%s0 + $0x548] sm:$0xff]
  %v194 = vld [vmem:[%s0 + $0x550] sm:$0xff]
  %v195 = vld [vmem:[%s0 + $0x558] sm:$0xff]
  %v196 = vld [vmem:[%s0 + $0x560] sm:$0xff]
  %v197 = vld [vmem:[%s0 + $0x568] sm:$0xff]
  %v198 = vld [vmem:[%s0 + $0x570] sm:$0xff]
  %v199 = vld [vmem:[%s0 + $0x578] sm:$0xff]
  %v200 = vld [vmem:[%s0 + $0x580] sm:$0xff]
  %v201 = vld [vmem:[%s0 + $0x588] sm:$0xff]
  %v202 = vld [vmem:[%s0 + $0x590] sm:$0xff]
  %v203 = vld [vmem:[%s0 + $0x598] sm:$0xff]
  %v204 = vld [vmem:[%s0 + $0x5a0] sm:$0xff]
  %v205 = vld [vmem:[%s0 + $0x5a8] sm:$0xff]
  %v206 = vld [vmem:[%s0 + $0x5b0] sm:$0xff]
  %v207 = vld [vmem:[%s0 + $0x5b8] sm:$0xff]
  %v208 = vld [vmem:[%s0 + $0x5c0] sm:$0xff]
  %v209 = vld [vmem:[%s0 + $0x5c8] sm:$0xff]
  %v210 = vld [vmem:[%s0 + $0x5d0] sm:$0xff]
  %v211 = vld [vmem:[%s0 + $0x5d8] sm:$0xff]
  %v212 = vld [vmem:[%s0 + $0x5e0] sm:$0xff]
  %v213 = vld [vmem:[%s0 + $0x5e8] sm:$0xff]
  %v214 = vld [vmem:[%s0 + $0x5f0] sm:$0xff]
  %v215 = vld [vmem:[%s0 + $0x5f8] sm:$0xff]
  %v216 = vld [vmem:[%s0 + $0x600] sm:$0xff]
  %v217 = vld [vmem:[%s0 + $0x608] sm:$0xff]
  %v218 = vld [vmem:[%s0 + $0x610] sm:$0xff]
  %v219 = vld [vmem:[%s0 + $0x618] sm:$0xff]
  %v220 = vld [vmem:[%s0 + $0x620] sm:$0xff]
  %v221 = vld [vmem:[%s0 + $0x628] sm:$0xff]
  %v222 = vld [vmem:[%s0 + $0x630] sm:$0xff]
  %v223 = vld [vmem:[%s0 + $0x638] sm:$0xff]
  %v224 = vld [vmem:[%s0 + $0x640] sm:$0xff]
  %v225 = vld [vmem:[%s0 + $0x648] sm:$0xff]
  %v226 = vld [vmem:[%s0 + $0x650] sm:$0xff]
  %v227 = vld [vmem:[%s0 + $0x658] sm:$0xff]
  %v228 = vld [vmem:[%s0 + $0x660] sm:$0xff]
  %v229 = vld [vmem:[%s0 + $0x668] sm:$0xff]
  %v230 = vld [vmem:[%s0 + $0x670] sm:$0xff]
  %v231 = vld [vmem:[%s0 + $0x678] sm:$0xff]
  %v232 = vld [vmem:[%s0 + $0x680] sm:$0xff]
  %v233 = vld [vmem:[%s0 + $0x688] sm:$0xff]
  %v234 = vld [vmem:[%s0 + $0x690] sm:$0xff]
  %v235 = vld [vmem:[%s0 + $0x698] sm:$0xff]
  %v236 = vld [vmem:[%s0 + $0x6a0] sm:$0xff]
  %v237 = vld [vmem:[%s0 + $0x6a8] sm:$0xff]
  %v238 = vld [vmem:[%s0 + $0x6b0] sm:$0xff]
  %v239 = vld [vmem:[%s0 + $0x6b8] sm:$0xff]
  %v240 = vld [vmem:[%s0 + $0x6c0] sm:$0xff]
  %v241 = vld [vmem:[%s0 + $0x6c8] sm:$0xff]
  %v242 = vld [vmem:[%s0 + $0x6d0] sm:$0xff]
  %v243 = vld [vmem:[%s0 + $0x6d8] sm:$0xff]
  %v244 = vld [vmem:[%s0 + $0x6e0] sm:$0xff]
  %v245 = vld [vmem:[%s0 + $0x6e8] sm:$0xff]
  %v246 = vld [vmem:[%s0 + $0x6f0] sm:$0xff]
  %v247 = vld [vmem:[%s0 + $0x6f8] sm:$0xff]
  %v248 = vld [vmem:[%s0 + $0x700] sm:$0xff]
  %v249 = vld [vmem:[%s0 + $0x708] sm:$0xff]
  %v250 = vld [vmem:[%s0 + $0x710] sm:$0xff]
  %v251 = vld [vmem:[%s0 + $0x718] sm:$0xff]
  %v252 = vld [vmem:[%s0 + $0x720] sm:$0xff]
  %v253 = vld [vmem:[%s0 + $0x728] sm:$0xff]
  %v254 = vld [vmem:[%s0 + $0x730] sm:$0xff]
  %v255 = vld [vmem:[%s0 + $0x738] sm:$0xff]
  %v256 = vld [vmem:[%s0 + $0x740] sm:$0xff]
  %v257 = vld [vmem:[%s0 + $0x748] sm:$0xff]
  %v258 = vld [vmem:[%s0 + $0x750] sm:$0xff]
  %v259 = vld [vmem:[%s0 + $0x758] sm:$0xff]
  %v260 = vld [vmem:[%s0 + $0x760] sm:$0xff]
  %v261 = vld [vmem:[%s0 + $0x768] sm:$0xff]
  %v262 = vld [vmem:[%s0 + $0x770] sm:$0xff]
  %v263 = vld [vmem:[%s0 + $0x778] sm:$0xff]
  %v264 = vld [vmem:[%s0 + $0x780] sm:$0xff]
  %v265 = vld [vmem:[%s0 + $0x788] sm:$0xff]
  %v266 = vld [vmem:[%s0 + $0x790] sm:$0xff]
  %v267 = vld [vmem:[%s0 + $0x798] sm:$0xff]
  %v268 = vld [vmem:[%s0 + $0x7a0] sm:$0xff]
  %v269 = vld [vmem:[%s0 + $0x7a8] sm:$0xff]
  %v270 = vld [vmem:[%s0 + $0x7b0] sm:$0xff]
  %v271 = vld [vmem:[%s0 + $0x7b8] sm:$0xff]
  %v272 = vld [vmem:[%s0 + $0x7c0] sm:$0xff]
  %v273 = vld [vmem:[%s0 + $0x7c8] sm:$0xff]
  %v274 = vld [vmem:[%s0 + $0x7d0] sm:$0xff]
  %v275 = vld [vmem:[%s0 + $0x7d8] sm:$0xff]
  %v276 = vld [vmem:[%s0 + $0x7e0] sm:$0xff]
  %v277 = vld [vmem:[%s0 + $0x7e8] sm:$0xff]
  %v278 = vld [vmem:[%s0 + $0x7f0] sm:$0xff]
  %v279 = vld [vmem:[%s0 + $0x7f8] sm:$0xff]
  %v280 = vadd.f32 %v24, %v40
  %v281 = vrot.slane %v280, 4
  %v282 = vadd.f32 %v280, %v281
  %v283 = vrot.slane %v282, 2
  %v284 = vadd.f32 %v282, %v283
  %v285 = vrot.slane %v284, 1
  %v286 = vadd.f32 %v284, %v285
  %v287 = vadd.f32 %v25, %v41
  %v288 = vrot.slane %v287, 4
  %v289 = vadd.f32 %v287, %v288
  %v290 = vrot.slane %v289, 2
  %v291 = vadd.f32 %v289, %v290
  %v292 = vrot.slane %v291, 1
  %v293 = vadd.f32 %v291, %v292
  %v294 = vadd.f32 %v26, %v42
  %v295 = vrot.slane %v294, 4
  %v296 = vadd.f32 %v294, %v295
  %v297 = vrot.slane %v296, 2
  %v298 = vadd.f32 %v296, %v297
  %v299 = vrot.slane %v298, 1
  %v300 = vadd.f32 %v298, %v299
  %v301 = vadd.f32 %v27, %v43
  %v302 = vrot.slane %v301, 4
  %v303 = vadd.f32 %v301, %v302
  %v304 = vrot.slane %v303, 2
  %v305 = vadd.f32 %v303, %v304
  %v306 = vrot.slane %v305, 1
  %v307 = vadd.f32 %v305, %v306
  %v308 = vadd.f32 %v28, %v44
  %v309 = vrot.slane %v308, 4
  %v310 = vadd.f32 %v308, %v309
  %v311 = vrot.slane %v310, 2
  %v312 = vadd.f32 %v310, %v311
  %v313 = vrot.slane %v312, 1
  %v314 = vadd.f32 %v312, %v313
  %v315 = vadd.f32 %v29, %v45
  %v316 = vrot.slane %v315, 4
  %v317 = vadd.f32 %v315, %v316
  %v318 = vrot.slane %v317, 2
  %v319 = vadd.f32 %v317, %v318
  %v320 = vrot.slane %v319, 1
  %v321 = vadd.f32 %v319, %v320
  %v322 = vadd.f32 %v30, %v46
  %v323 = vrot.slane %v322, 4
  %v324 = vadd.f32 %v322, %v323
  %v325 = vrot.slane %v324, 2
  %v326 = vadd.f32 %v324, %v325
  %v327 = vrot.slane %v326, 1
  %v328 = vadd.f32 %v326, %v327
  %v329 = vadd.f32 %v31, %v47
  %v330 = vrot.slane %v329, 4
  %v331 = vadd.f32 %v329, %v330
  %v332 = vrot.slane %v331, 2
  %v333 = vadd.f32 %v331, %v332
  %v334 = vrot.slane %v333, 1
  %v335 = vadd.f32 %v333, %v334
  %v336 = vadd.f32 %v32, %v48
  %v337 = vrot.slane %v336, 4
  %v338 = vadd.f32 %v336, %v337
  %v339 = vrot.slane %v338, 2
  %v340 = vadd.f32 %v338, %v339
  %v341 = vrot.slane %v340, 1
  %v342 = vadd.f32 %v340, %v341
  %v343 = vadd.f32 %v33, %v49
  %v344 = vrot.slane %v343, 4
  %v345 = vadd.f32 %v343, %v344
  %v346 = vrot.slane %v345, 2
  %v347 = vadd.f32 %v345, %v346
  %v348 = vrot.slane %v347, 1
  %v349 = vadd.f32 %v347, %v348
  %v350 = vadd.f32 %v34, %v50
  %v351 = vrot.slane %v350, 4
  %v352 = vadd.f32 %v350, %v351
  %v353 = vrot.slane %v352, 2
  %v354 = vadd.f32 %v352, %v353
  %v355 = vrot.slane %v354, 1
  %v356 = vadd.f32 %v354, %v355
  %v357 = vadd.f32 %v35, %v51
  %v358 = vrot.slane %v357, 4
  %v359 = vadd.f32 %v357, %v358
  %v360 = vrot.slane %v359, 2
  %v361 = vadd.f32 %v359, %v360
  %v362 = vrot.slane %v361, 1
  %v363 = vadd.f32 %v361, %v362
  %v364 = vadd.f32 %v36, %v52
  %v365 = vrot.slane %v364, 4
  %v366 = vadd.f32 %v364, %v365
  %v367 = vrot.slane %v366, 2
  %v368 = vadd.f32 %v366, %v367
  %v369 = vrot.slane %v368, 1
  %v370 = vadd.f32 %v368, %v369
  %v371 = vadd.f32 %v37, %v53
  %v372 = vrot.slane %v371, 4
  %v373 = vadd.f32 %v371, %v372
  %v374 = vrot.slane %v373, 2
  %v375 = vadd.f32 %v373, %v374
  %v376 = vrot.slane %v375, 1
  %v377 = vadd.f32 %v375, %v376
  %v378 = vadd.f32 %v38, %v54
  %v379 = vrot.slane %v378, 4
  %v380 = vadd.f32 %v378, %v379
  %v381 = vrot.slane %v380, 2
  %v382 = vadd.f32 %v380, %v381
  %v383 = vrot.slane %v382, 1
  %v384 = vadd.f32 %v382, %v383
  %v385 = vadd.f32 %v39, %v55
  %v386 = vrot.slane %v385, 4
  %v387 = vadd.f32 %v385, %v386
  %v388 = vrot.slane %v387, 2
  %v389 = vadd.f32 %v387, %v388
  %v390 = vrot.slane %v389, 1
  %v391 = vadd.f32 %v389, %v390
  %v392 = vadd.f32 %v56, %v72
  %v393 = vrot.slane %v392, 4
  %v394 = vadd.f32 %v392, %v393
  %v395 = vrot.slane %v394, 2
  %v396 = vadd.f32 %v394, %v395
  %v397 = vrot.slane %v396, 1
  %v398 = vadd.f32 %v396, %v397
  %v399 = vadd.f32 %v57, %v73
  %v400 = vrot.slane %v399, 4
  %v401 = vadd.f32 %v399, %v400
  %v402 = vrot.slane %v401, 2
  %v403 = vadd.f32 %v401, %v402
  %v404 = vrot.slane %v403, 1
  %v405 = vadd.f32 %v403, %v404
  %v406 = vadd.f32 %v58, %v74
  %v407 = vrot.slane %v406, 4
  %v408 = vadd.f32 %v406, %v407
  %v409 = vrot.slane %v408, 2
  %v410 = vadd.f32 %v408, %v409
  %v411 = vrot.slane %v410, 1
  %v412 = vadd.f32 %v410, %v411
  %v413 = vadd.f32 %v59, %v75
  %v414 = vrot.slane %v413, 4
  %v415 = vadd.f32 %v413, %v414
  %v416 = vrot.slane %v415, 2
  %v417 = vadd.f32 %v415, %v416
  %v418 = vrot.slane %v417, 1
  %v419 = vadd.f32 %v417, %v418
  %v420 = vadd.f32 %v60, %v76
  %v421 = vrot.slane %v420, 4
  %v422 = vadd.f32 %v420, %v421
  %v423 = vrot.slane %v422, 2
  %v424 = vadd.f32 %v422, %v423
  %v425 = vrot.slane %v424, 1
  %v426 = vadd.f32 %v424, %v425
  %v427 = vadd.f32 %v61, %v77
  %v428 = vrot.slane %v427, 4
  %v429 = vadd.f32 %v427, %v428
  %v430 = vrot.slane %v429, 2
  %v431 = vadd.f32 %v429, %v430
  %v432 = vrot.slane %v431, 1
  %v433 = vadd.f32 %v431, %v432
  %v434 = vadd.f32 %v62, %v78
  %v435 = vrot.slane %v434, 4
  %v436 = vadd.f32 %v434, %v435
  %v437 = vrot.slane %v436, 2
  %v438 = vadd.f32 %v436, %v437
  %v439 = vrot.slane %v438, 1
  %v440 = vadd.f32 %v438, %v439
  %v441 = vadd.f32 %v63, %v79
  %v442 = vrot.slane %v441, 4
  %v443 = vadd.f32 %v441, %v442
  %v444 = vrot.slane %v443, 2
  %v445 = vadd.f32 %v443, %v444
  %v446 = vrot.slane %v445, 1
  %v447 = vadd.f32 %v445, %v446
  %v448 = vadd.f32 %v64, %v80
  %v449 = vrot.slane %v448, 4
  %v450 = vadd.f32 %v448, %v449
  %v451 = vrot.slane %v450, 2
  %v452 = vadd.f32 %v450, %v451
  %v453 = vrot.slane %v452, 1
  %v454 = vadd.f32 %v452, %v453
  %v455 = vadd.f32 %v65, %v81
  %v456 = vrot.slane %v455, 4
  %v457 = vadd.f32 %v455, %v456
  %v458 = vrot.slane %v457, 2
  %v459 = vadd.f32 %v457, %v458
  %v460 = vrot.slane %v459, 1
  %v461 = vadd.f32 %v459, %v460
  %v462 = vadd.f32 %v66, %v82
  %v463 = vrot.slane %v462, 4
  %v464 = vadd.f32 %v462, %v463
  %v465 = vrot.slane %v464, 2
  %v466 = vadd.f32 %v464, %v465
  %v467 = vrot.slane %v466, 1
  %v468 = vadd.f32 %v466, %v467
  %v469 = vadd.f32 %v67, %v83
  %v470 = vrot.slane %v469, 4
  %v471 = vadd.f32 %v469, %v470
  %v472 = vrot.slane %v471, 2
  %v473 = vadd.f32 %v471, %v472
  %v474 = vrot.slane %v473, 1
  %v475 = vadd.f32 %v473, %v474
  %v476 = vadd.f32 %v68, %v84
  %v477 = vrot.slane %v476, 4
  %v478 = vadd.f32 %v476, %v477
  %v479 = vrot.slane %v478, 2
  %v480 = vadd.f32 %v478, %v479
  %v481 = vrot.slane %v480, 1
  %v482 = vadd.f32 %v480, %v481
  %v483 = vadd.f32 %v69, %v85
  %v484 = vrot.slane %v483, 4
  %v485 = vadd.f32 %v483, %v484
  %v486 = vrot.slane %v485, 2
  %v487 = vadd.f32 %v485, %v486
  %v488 = vrot.slane %v487, 1
  %v489 = vadd.f32 %v487, %v488
  %v490 = vadd.f32 %v70, %v86
  %v491 = vrot.slane %v490, 4
  %v492 = vadd.f32 %v490, %v491
  %v493 = vrot.slane %v492, 2
  %v494 = vadd.f32 %v492, %v493
  %v495 = vrot.slane %v494, 1
  %v496 = vadd.f32 %v494, %v495
  %v497 = vadd.f32 %v71, %v87
  %v498 = vrot.slane %v497, 4
  %v499 = vadd.f32 %v497, %v498
  %v500 = vrot.slane %v499, 2
  %v501 = vadd.f32 %v499, %v500
  %v502 = vrot.slane %v501, 1
  %v503 = vadd.f32 %v501, %v502
  %v504 = vadd.f32 %v88, %v104
  %v505 = vrot.slane %v504, 4
  %v506 = vadd.f32 %v504, %v505
  %v507 = vrot.slane %v506, 2
  %v508 = vadd.f32 %v506, %v507
  %v509 = vrot.slane %v508, 1
  %v510 = vadd.f32 %v508, %v509
  %v511 = vadd.f32 %v89, %v105
  %v512 = vrot.slane %v511, 4
  %v513 = vadd.f32 %v511, %v512
  %v514 = vrot.slane %v513, 2
  %v515 = vadd.f32 %v513, %v514
  %v516 = vrot.slane %v515, 1
  %v517 = vadd.f32 %v515, %v516
  %v518 = vadd.f32 %v90, %v106
  %v519 = vrot.slane %v518, 4
  %v520 = vadd.f32 %v518, %v519
  %v521 = vrot.slane %v520, 2
  %v522 = vadd.f32 %v520, %v521
  %v523 = vrot.slane %v522, 1
  %v524 = vadd.f32 %v522, %v523
  %v525 = vadd.f32 %v91, %v107
  %v526 = vrot.slane %v525, 4
  %v527 = vadd.f32 %v525, %v526
  %v528 = vrot.slane %v527, 2
  %v529 = vadd.f32 %v527, %v528
  %v530 = vrot.slane %v529, 1
  %v531 = vadd.f32 %v529, %v530
  %v532 = vadd.f32 %v92, %v108
  %v533 = vrot.slane %v532, 4
  %v534 = vadd.f32 %v532, %v533
  %v535 = vrot.slane %v534, 2
  %v536 = vadd.f32 %v534, %v535
  %v537 = vrot.slane %v536, 1
  %v538 = vadd.f32 %v536, %v537
  %v539 = vadd.f32 %v93, %v109
  %v540 = vrot.slane %v539, 4
  %v541 = vadd.f32 %v539, %v540
  %v542 = vrot.slane %v541, 2
  %v543 = vadd.f32 %v541, %v542
  %v544 = vrot.slane %v543, 1
  %v545 = vadd.f32 %v543, %v544
  %v546 = vadd.f32 %v94, %v110
  %v547 = vrot.slane %v546, 4
  %v548 = vadd.f32 %v546, %v547
  %v549 = vrot.slane %v548, 2
  %v550 = vadd.f32 %v548, %v549
  %v551 = vrot.slane %v550, 1
  %v552 = vadd.f32 %v550, %v551
  %v553 = vadd.f32 %v95, %v111
  %v554 = vrot.slane %v553, 4
  %v555 = vadd.f32 %v553, %v554
  %v556 = vrot.slane %v555, 2
  %v557 = vadd.f32 %v555, %v556
  %v558 = vrot.slane %v557, 1
  %v559 = vadd.f32 %v557, %v558
  %v560 = vadd.f32 %v96, %v112
  %v561 = vrot.slane %v560, 4
  %v562 = vadd.f32 %v560, %v561
  %v563 = vrot.slane %v562, 2
  %v564 = vadd.f32 %v562, %v563
  %v565 = vrot.slane %v564, 1
  %v566 = vadd.f32 %v564, %v565
  %v567 = vadd.f32 %v97, %v113
  %v568 = vrot.slane %v567, 4
  %v569 = vadd.f32 %v567, %v568
  %v570 = vrot.slane %v569, 2
  %v571 = vadd.f32 %v569, %v570
  %v572 = vrot.slane %v571, 1
  %v573 = vadd.f32 %v571, %v572
  %v574 = vadd.f32 %v98, %v114
  %v575 = vrot.slane %v574, 4
  %v576 = vadd.f32 %v574, %v575
  %v577 = vrot.slane %v576, 2
  %v578 = vadd.f32 %v576, %v577
  %v579 = vrot.slane %v578, 1
  %v580 = vadd.f32 %v578, %v579
  %v581 = vadd.f32 %v99, %v115
  %v582 = vrot.slane %v581, 4
  %v583 = vadd.f32 %v581, %v582
  %v584 = vrot.slane %v583, 2
  %v585 = vadd.f32 %v583, %v584
  %v586 = vrot.slane %v585, 1
  %v587 = vadd.f32 %v585, %v586
  %v588 = vadd.f32 %v100, %v116
  %v589 = vrot.slane %v588, 4
  %v590 = vadd.f32 %v588, %v589
  %v591 = vrot.slane %v590, 2
  %v592 = vadd.f32 %v590, %v591
  %v593 = vrot.slane %v592, 1
  %v594 = vadd.f32 %v592, %v593
  %v595 = vadd.f32 %v101, %v117
  %v596 = vrot.slane %v595, 4
  %v597 = vadd.f32 %v595, %v596
  %v598 = vrot.slane %v597, 2
  %v599 = vadd.f32 %v597, %v598
  %v600 = vrot.slane %v599, 1
  %v601 = vadd.f32 %v599, %v600
  %v602 = vadd.f32 %v102, %v118
  %v603 = vrot.slane %v602, 4
  %v604 = vadd.f32 %v602, %v603
  %v605 = vrot.slane %v604, 2
  %v606 = vadd.f32 %v604, %v605
  %v607 = vrot.slane %v606, 1
  %v608 = vadd.f32 %v606, %v607
  %v609 = vadd.f32 %v103, %v119
  %v610 = vrot.slane %v609, 4
  %v611 = vadd.f32 %v609, %v610
  %v612 = vrot.slane %v611, 2
  %v613 = vadd.f32 %v611, %v612
  %v614 = vrot.slane %v613, 1
  %v615 = vadd.f32 %v613, %v614
  %v616 = vadd.f32 %v120, %v136
  %v617 = vrot.slane %v616, 4
  %v618 = vadd.f32 %v616, %v617
  %v619 = vrot.slane %v618, 2
  %v620 = vadd.f32 %v618, %v619
  %v621 = vrot.slane %v620, 1
  %v622 = vadd.f32 %v620, %v621
  %v623 = vadd.f32 %v121, %v137
  %v624 = vrot.slane %v623, 4
  %v625 = vadd.f32 %v623, %v624
  %v626 = vrot.slane %v625, 2
  %v627 = vadd.f32 %v625, %v626
  %v628 = vrot.slane %v627, 1
  %v629 = vadd.f32 %v627, %v628
  %v630 = vadd.f32 %v122, %v138
  %v631 = vrot.slane %v630, 4
  %v632 = vadd.f32 %v630, %v631
  %v633 = vrot.slane %v632, 2
  %v634 = vadd.f32 %v632, %v633
  %v635 = vrot.slane %v634, 1
  %v636 = vadd.f32 %v634, %v635
  %v637 = vadd.f32 %v123, %v139
  %v638 = vrot.slane %v637, 4
  %v639 = vadd.f32 %v637, %v638
  %v640 = vrot.slane %v639, 2
  %v641 = vadd.f32 %v639, %v640
  %v642 = vrot.slane %v641, 1
  %v643 = vadd.f32 %v641, %v642
  %v644 = vadd.f32 %v124, %v140
  %v645 = vrot.slane %v644, 4
  %v646 = vadd.f32 %v644, %v645
  %v647 = vrot.slane %v646, 2
  %v648 = vadd.f32 %v646, %v647
  %v649 = vrot.slane %v648, 1
  %v650 = vadd.f32 %v648, %v649
  %v651 = vadd.f32 %v125, %v141
  %v652 = vrot.slane %v651, 4
  %v653 = vadd.f32 %v651, %v652
  %v654 = vrot.slane %v653, 2
  %v655 = vadd.f32 %v653, %v654
  %v656 = vrot.slane %v655, 1
  %v657 = vadd.f32 %v655, %v656
  %v658 = vadd.f32 %v126, %v142
  %v659 = vrot.slane %v658, 4
  %v660 = vadd.f32 %v658, %v659
  %v661 = vrot.slane %v660, 2
  %v662 = vadd.f32 %v660, %v661
  %v663 = vrot.slane %v662, 1
  %v664 = vadd.f32 %v662, %v663
  %v665 = vadd.f32 %v127, %v143
  %v666 = vrot.slane %v665, 4
  %v667 = vadd.f32 %v665, %v666
  %v668 = vrot.slane %v667, 2
  %v669 = vadd.f32 %v667, %v668
  %v670 = vrot.slane %v669, 1
  %v671 = vadd.f32 %v669, %v670
  %v672 = vadd.f32 %v128, %v144
  %v673 = vrot.slane %v672, 4
  %v674 = vadd.f32 %v672, %v673
  %v675 = vrot.slane %v674, 2
  %v676 = vadd.f32 %v674, %v675
  %v677 = vrot.slane %v676, 1
  %v678 = vadd.f32 %v676, %v677
  %v679 = vadd.f32 %v129, %v145
  %v680 = vrot.slane %v679, 4
  %v681 = vadd.f32 %v679, %v680
  %v682 = vrot.slane %v681, 2
  %v683 = vadd.f32 %v681, %v682
  %v684 = vrot.slane %v683, 1
  %v685 = vadd.f32 %v683, %v684
  %v686 = vadd.f32 %v130, %v146
  %v687 = vrot.slane %v686, 4
  %v688 = vadd.f32 %v686, %v687
  %v689 = vrot.slane %v688, 2
  %v690 = vadd.f32 %v688, %v689
  %v691 = vrot.slane %v690, 1
  %v692 = vadd.f32 %v690, %v691
  %v693 = vadd.f32 %v131, %v147
  %v694 = vrot.slane %v693, 4
  %v695 = vadd.f32 %v693, %v694
  %v696 = vrot.slane %v695, 2
  %v697 = vadd.f32 %v695, %v696
  %v698 = vrot.slane %v697, 1
  %v699 = vadd.f32 %v697, %v698
  %v700 = vadd.f32 %v132, %v148
  %v701 = vrot.slane %v700, 4
  %v702 = vadd.f32 %v700, %v701
  %v703 = vrot.slane %v702, 2
  %v704 = vadd.f32 %v702, %v703
  %v705 = vrot.slane %v704, 1
  %v706 = vadd.f32 %v704, %v705
  %v707 = vadd.f32 %v133, %v149
  %v708 = vrot.slane %v707, 4
  %v709 = vadd.f32 %v707, %v708
  %v710 = vrot.slane %v709, 2
  %v711 = vadd.f32 %v709, %v710
  %v712 = vrot.slane %v711, 1
  %v713 = vadd.f32 %v711, %v712
  %v714 = vadd.f32 %v134, %v150
  %v715 = vrot.slane %v714, 4
  %v716 = vadd.f32 %v714, %v715
  %v717 = vrot.slane %v716, 2
  %v718 = vadd.f32 %v716, %v717
  %v719 = vrot.slane %v718, 1
  %v720 = vadd.f32 %v718, %v719
  %v721 = vadd.f32 %v135, %v151
  %v722 = vrot.slane %v721, 4
  %v723 = vadd.f32 %v721, %v722
  %v724 = vrot.slane %v723, 2
  %v725 = vadd.f32 %v723, %v724
  %v726 = vrot.slane %v725, 1
  %v727 = vadd.f32 %v725, %v726
  %v728 = vadd.f32 %v152, %v168
  %v729 = vrot.slane %v728, 4
  %v730 = vadd.f32 %v728, %v729
  %v731 = vrot.slane %v730, 2
  %v732 = vadd.f32 %v730, %v731
  %v733 = vrot.slane %v732, 1
  %v734 = vadd.f32 %v732, %v733
  %v735 = vadd.f32 %v153, %v169
  %v736 = vrot.slane %v735, 4
  %v737 = vadd.f32 %v735, %v736
  %v738 = vrot.slane %v737, 2
  %v739 = vadd.f32 %v737, %v738
  %v740 = vrot.slane %v739, 1
  %v741 = vadd.f32 %v739, %v740
  %v742 = vadd.f32 %v154, %v170
  %v743 = vrot.slane %v742, 4
  %v744 = vadd.f32 %v742, %v743
  %v745 = vrot.slane %v744, 2
  %v746 = vadd.f32 %v744, %v745
  %v747 = vrot.slane %v746, 1
  %v748 = vadd.f32 %v746, %v747
  %v749 = vadd.f32 %v155, %v171
  %v750 = vrot.slane %v749, 4
  %v751 = vadd.f32 %v749, %v750
  %v752 = vrot.slane %v751, 2
  %v753 = vadd.f32 %v751, %v752
  %v754 = vrot.slane %v753, 1
  %v755 = vadd.f32 %v753, %v754
  %v756 = vadd.f32 %v156, %v172
  %v757 = vrot.slane %v756, 4
  %v758 = vadd.f32 %v756, %v757
  %v759 = vrot.slane %v758, 2
  %v760 = vadd.f32 %v758, %v759
  %v761 = vrot.slane %v760, 1
  %v762 = vadd.f32 %v760, %v761
  %v763 = vadd.f32 %v157, %v173
  %v764 = vrot.slane %v763, 4
  %v765 = vadd.f32 %v763, %v764
  %v766 = vrot.slane %v765, 2
  %v767 = vadd.f32 %v765, %v766
  %v768 = vrot.slane %v767, 1
  %v769 = vadd.f32 %v767, %v768
  %v770 = vadd.f32 %v158, %v174
  %v771 = vrot.slane %v770, 4
  %v772 = vadd.f32 %v770, %v771
  %v773 = vrot.slane %v772, 2
  %v774 = vadd.f32 %v772, %v773
  %v775 = vrot.slane %v774, 1
  %v776 = vadd.f32 %v774, %v775
  %v777 = vadd.f32 %v159, %v175
  %v778 = vrot.slane %v777, 4
  %v779 = vadd.f32 %v777, %v778
  %v780 = vrot.slane %v779, 2
  %v781 = vadd.f32 %v779, %v780
  %v782 = vrot.slane %v781, 1
  %v783 = vadd.f32 %v781, %v782
  %v784 = vadd.f32 %v160, %v176
  %v785 = vrot.slane %v784, 4
  %v786 = vadd.f32 %v784, %v785
  %v787 = vrot.slane %v786, 2
  %v788 = vadd.f32 %v786, %v787
  %v789 = vrot.slane %v788, 1
  %v790 = vadd.f32 %v788, %v789
  %v791 = vadd.f32 %v161, %v177
  %v792 = vrot.slane %v791, 4
  %v793 = vadd.f32 %v791, %v792
  %v794 = vrot.slane %v793, 2
  %v795 = vadd.f32 %v793, %v794
  %v796 = vrot.slane %v795, 1
  %v797 = vadd.f32 %v795, %v796
  %v798 = vadd.f32 %v162, %v178
  %v799 = vrot.slane %v798, 4
  %v800 = vadd.f32 %v798, %v799
  %v801 = vrot.slane %v800, 2
  %v802 = vadd.f32 %v800, %v801
  %v803 = vrot.slane %v802, 1
  %v804 = vadd.f32 %v802, %v803
  %v805 = vadd.f32 %v163, %v179
  %v806 = vrot.slane %v805, 4
  %v807 = vadd.f32 %v805, %v806
  %v808 = vrot.slane %v807, 2
  %v809 = vadd.f32 %v807, %v808
  %v810 = vrot.slane %v809, 1
  %v811 = vadd.f32 %v809, %v810
  %v812 = vadd.f32 %v164, %v180
  %v813 = vrot.slane %v812, 4
  %v814 = vadd.f32 %v812, %v813
  %v815 = vrot.slane %v814, 2
  %v816 = vadd.f32 %v814, %v815
  %v817 = vrot.slane %v816, 1
  %v818 = vadd.f32 %v816, %v817
  %v819 = vadd.f32 %v165, %v181
  %v820 = vrot.slane %v819, 4
  %v821 = vadd.f32 %v819, %v820
  %v822 = vrot.slane %v821, 2
  %v823 = vadd.f32 %v821, %v822
  %v824 = vrot.slane %v823, 1
  %v825 = vadd.f32 %v823, %v824
  %v826 = vadd.f32 %v166, %v182
  %v827 = vrot.slane %v826, 4
  %v828 = vadd.f32 %v826, %v827
  %v829 = vrot.slane %v828, 2
  %v830 = vadd.f32 %v828, %v829
  %v831 = vrot.slane %v830, 1
  %v832 = vadd.f32 %v830, %v831
  %v833 = vadd.f32 %v167, %v183
  %v834 = vrot.slane %v833, 4
  %v835 = vadd.f32 %v833, %v834
  %v836 = vrot.slane %v835, 2
  %v837 = vadd.f32 %v835, %v836
  %v838 = vrot.slane %v837, 1
  %v839 = vadd.f32 %v837, %v838
  %v840 = vadd.f32 %v184, %v200
  %v841 = vrot.slane %v840, 4
  %v842 = vadd.f32 %v840, %v841
  %v843 = vrot.slane %v842, 2
  %v844 = vadd.f32 %v842, %v843
  %v845 = vrot.slane %v844, 1
  %v846 = vadd.f32 %v844, %v845
  %v847 = vadd.f32 %v185, %v201
  %v848 = vrot.slane %v847, 4
  %v849 = vadd.f32 %v847, %v848
  %v850 = vrot.slane %v849, 2
  %v851 = vadd.f32 %v849, %v850
  %v852 = vrot.slane %v851, 1
  %v853 = vadd.f32 %v851, %v852
  %v854 = vadd.f32 %v186, %v202
  %v855 = vrot.slane %v854, 4
  %v856 = vadd.f32 %v854, %v855
  %v857 = vrot.slane %v856, 2
  %v858 = vadd.f32 %v856, %v857
  %v859 = vrot.slane %v858, 1
  %v860 = vadd.f32 %v858, %v859
  %v861 = vadd.f32 %v187, %v203
  %v862 = vrot.slane %v861, 4
  %v863 = vadd.f32 %v861, %v862
  %v864 = vrot.slane %v863, 2
  %v865 = vadd.f32 %v863, %v864
  %v866 = vrot.slane %v865, 1
  %v867 = vadd.f32 %v865, %v866
  %v868 = vadd.f32 %v188, %v204
  %v869 = vrot.slane %v868, 4
  %v870 = vadd.f32 %v868, %v869
  %v871 = vrot.slane %v870, 2
  %v872 = vadd.f32 %v870, %v871
  %v873 = vrot.slane %v872, 1
  %v874 = vadd.f32 %v872, %v873
  %v875 = vadd.f32 %v189, %v205
  %v876 = vrot.slane %v875, 4
  %v877 = vadd.f32 %v875, %v876
  %v878 = vrot.slane %v877, 2
  %v879 = vadd.f32 %v877, %v878
  %v880 = vrot.slane %v879, 1
  %v881 = vadd.f32 %v879, %v880
  %v882 = vadd.f32 %v190, %v206
  %v883 = vrot.slane %v882, 4
  %v884 = vadd.f32 %v882, %v883
  %v885 = vrot.slane %v884, 2
  %v886 = vadd.f32 %v884, %v885
  %v887 = vrot.slane %v886, 1
  %v888 = vadd.f32 %v886, %v887
  %v889 = vadd.f32 %v191, %v207
  %v890 = vrot.slane %v889, 4
  %v891 = vadd.f32 %v889, %v890
  %v892 = vrot.slane %v891, 2
  %v893 = vadd.f32 %v891, %v892
  %v894 = vrot.slane %v893, 1
  %v895 = vadd.f32 %v893, %v894
  %v896 = vadd.f32 %v192, %v208
  %v897 = vrot.slane %v896, 4
  %v898 = vadd.f32 %v896, %v897
  %v899 = vrot.slane %v898, 2
  %v900 = vadd.f32 %v898, %v899
  %v901 = vrot.slane %v900, 1
  %v902 = vadd.f32 %v900, %v901
  %v903 = vadd.f32 %v193, %v209
  %v904 = vrot.slane %v903, 4
  %v905 = vadd.f32 %v903, %v904
  %v906 = vrot.slane %v905, 2
  %v907 = vadd.f32 %v905, %v906
  %v908 = vrot.slane %v907, 1
  %v909 = vadd.f32 %v907, %v908
  %v910 = vadd.f32 %v194, %v210
  %v911 = vrot.slane %v910, 4
  %v912 = vadd.f32 %v910, %v911
  %v913 = vrot.slane %v912, 2
  %v914 = vadd.f32 %v912, %v913
  %v915 = vrot.slane %v914, 1
  %v916 = vadd.f32 %v914, %v915
  %v917 = vadd.f32 %v195, %v211
  %v918 = vrot.slane %v917, 4
  %v919 = vadd.f32 %v917, %v918
  %v920 = vrot.slane %v919, 2
  %v921 = vadd.f32 %v919, %v920
  %v922 = vrot.slane %v921, 1
  %v923 = vadd.f32 %v921, %v922
  %v924 = vadd.f32 %v196, %v212
  %v925 = vrot.slane %v924, 4
  %v926 = vadd.f32 %v924, %v925
  %v927 = vrot.slane %v926, 2
  %v928 = vadd.f32 %v926, %v927
  %v929 = vrot.slane %v928, 1
  %v930 = vadd.f32 %v928, %v929
  %v931 = vadd.f32 %v197, %v213
  %v932 = vrot.slane %v931, 4
  %v933 = vadd.f32 %v931, %v932
  %v934 = vrot.slane %v933, 2
  %v935 = vadd.f32 %v933, %v934
  %v936 = vrot.slane %v935, 1
  %v937 = vadd.f32 %v935, %v936
  %v938 = vadd.f32 %v198, %v214
  %v939 = vrot.slane %v938, 4
  %v940 = vadd.f32 %v938, %v939
  %v941 = vrot.slane %v940, 2
  %v942 = vadd.f32 %v940, %v941
  %v943 = vrot.slane %v942, 1
  %v944 = vadd.f32 %v942, %v943
  %v945 = vadd.f32 %v199, %v215
  %v946 = vrot.slane %v945, 4
  %v947 = vadd.f32 %v945, %v946
  %v948 = vrot.slane %v947, 2
  %v949 = vadd.f32 %v947, %v948
  %v950 = vrot.slane %v949, 1
  %v951 = vadd.f32 %v949, %v950
  %v952 = vadd.f32 %v216, %v232
  %v953 = vrot.slane %v952, 4
  %v954 = vadd.f32 %v952, %v953
  %v955 = vrot.slane %v954, 2
  %v956 = vadd.f32 %v954, %v955
  %v957 = vrot.slane %v956, 1
  %v958 = vadd.f32 %v956, %v957
  %v959 = vadd.f32 %v217, %v233
  %v960 = vrot.slane %v959, 4
  %v961 = vadd.f32 %v959, %v960
  %v962 = vrot.slane %v961, 2
  %v963 = vadd.f32 %v961, %v962
  %v964 = vrot.slane %v963, 1
  %v965 = vadd.f32 %v963, %v964
  %v966 = vadd.f32 %v218, %v234
  %v967 = vrot.slane %v966, 4
  %v968 = vadd.f32 %v966, %v967
  %v969 = vrot.slane %v968, 2
  %v970 = vadd.f32 %v968, %v969
  %v971 = vrot.slane %v970, 1
  %v972 = vadd.f32 %v970, %v971
  %v973 = vadd.f32 %v219, %v235
  %v974 = vrot.slane %v973, 4
  %v975 = vadd.f32 %v973, %v974
  %v976 = vrot.slane %v975, 2
  %v977 = vadd.f32 %v975, %v976
  %v978 = vrot.slane %v977, 1
  %v979 = vadd.f32 %v977, %v978
  %v980 = vadd.f32 %v220, %v236
  %v981 = vrot.slane %v980, 4
  %v982 = vadd.f32 %v980, %v981
  %v983 = vrot.slane %v982, 2
  %v984 = vadd.f32 %v982, %v983
  %v985 = vrot.slane %v984, 1
  %v986 = vadd.f32 %v984, %v985
  %v987 = vadd.f32 %v221, %v237
  %v988 = vrot.slane %v987, 4
  %v989 = vadd.f32 %v987, %v988
  %v990 = vrot.slane %v989, 2
  %v991 = vadd.f32 %v989, %v990
  %v992 = vrot.slane %v991, 1
  %v993 = vadd.f32 %v991, %v992
  %v994 = vadd.f32 %v222, %v238
  %v995 = vrot.slane %v994, 4
  %v996 = vadd.f32 %v994, %v995
  %v997 = vrot.slane %v996, 2
  %v998 = vadd.f32 %v996, %v997
  %v999 = vrot.slane %v998, 1
  %v1000 = vadd.f32 %v998, %v999
  %v1001 = vadd.f32 %v223, %v239
  %v1002 = vrot.slane %v1001, 4
  %v1003 = vadd.f32 %v1001, %v1002
  %v1004 = vrot.slane %v1003, 2
  %v1005 = vadd.f32 %v1003, %v1004
  %v1006 = vrot.slane %v1005, 1
  %v1007 = vadd.f32 %v1005, %v1006
  %v1008 = vadd.f32 %v224, %v240
  %v1009 = vrot.slane %v1008, 4
  %v1010 = vadd.f32 %v1008, %v1009
  %v1011 = vrot.slane %v1010, 2
  %v1012 = vadd.f32 %v1010, %v1011
  %v1013 = vrot.slane %v1012, 1
  %v1014 = vadd.f32 %v1012, %v1013
  %v1015 = vadd.f32 %v225, %v241
  %v1016 = vrot.slane %v1015, 4
  %v1017 = vadd.f32 %v1015, %v1016
  %v1018 = vrot.slane %v1017, 2
  %v1019 = vadd.f32 %v1017, %v1018
  %v1020 = vrot.slane %v1019, 1
  %v1021 = vadd.f32 %v1019, %v1020
  %v1022 = vadd.f32 %v226, %v242
  %v1023 = vrot.slane %v1022, 4
  %v1024 = vadd.f32 %v1022, %v1023
  %v1025 = vrot.slane %v1024, 2
  %v1026 = vadd.f32 %v1024, %v1025
  %v1027 = vrot.slane %v1026, 1
  %v1028 = vadd.f32 %v1026, %v1027
  %v1029 = vadd.f32 %v227, %v243
  %v1030 = vrot.slane %v1029, 4
  %v1031 = vadd.f32 %v1029, %v1030
  %v1032 = vrot.slane %v1031, 2
  %v1033 = vadd.f32 %v1031, %v1032
  %v1034 = vrot.slane %v1033, 1
  %v1035 = vadd.f32 %v1033, %v1034
  %v1036 = vadd.f32 %v228, %v244
  %v1037 = vrot.slane %v1036, 4
  %v1038 = vadd.f32 %v1036, %v1037
  %v1039 = vrot.slane %v1038, 2
  %v1040 = vadd.f32 %v1038, %v1039
  %v1041 = vrot.slane %v1040, 1
  %v1042 = vadd.f32 %v1040, %v1041
  %v1043 = vadd.f32 %v229, %v245
  %v1044 = vrot.slane %v1043, 4
  %v1045 = vadd.f32 %v1043, %v1044
  %v1046 = vrot.slane %v1045, 2
  %v1047 = vadd.f32 %v1045, %v1046
  %v1048 = vrot.slane %v1047, 1
  %v1049 = vadd.f32 %v1047, %v1048
  %v1050 = vadd.f32 %v230, %v246
  %v1051 = vrot.slane %v1050, 4
  %v1052 = vadd.f32 %v1050, %v1051
  %v1053 = vrot.slane %v1052, 2
  %v1054 = vadd.f32 %v1052, %v1053
  %v1055 = vrot.slane %v1054, 1
  %v1056 = vadd.f32 %v1054, %v1055
  %v1057 = vadd.f32 %v231, %v247
  %v1058 = vrot.slane %v1057, 4
  %v1059 = vadd.f32 %v1057, %v1058
  %v1060 = vrot.slane %v1059, 2
  %v1061 = vadd.f32 %v1059, %v1060
  %v1062 = vrot.slane %v1061, 1
  %v1063 = vadd.f32 %v1061, %v1062
  %v1064 = vadd.f32 %v248, %v264
  %v1065 = vrot.slane %v1064, 4
  %v1066 = vadd.f32 %v1064, %v1065
  %v1067 = vrot.slane %v1066, 2
  %v1068 = vadd.f32 %v1066, %v1067
  %v1069 = vrot.slane %v1068, 1
  %v1070 = vadd.f32 %v1068, %v1069
  %v1071 = vadd.f32 %v249, %v265
  %v1072 = vrot.slane %v1071, 4
  %v1073 = vadd.f32 %v1071, %v1072
  %v1074 = vrot.slane %v1073, 2
  %v1075 = vadd.f32 %v1073, %v1074
  %v1076 = vrot.slane %v1075, 1
  %v1077 = vadd.f32 %v1075, %v1076
  %v1078 = vadd.f32 %v250, %v266
  %v1079 = vrot.slane %v1078, 4
  %v1080 = vadd.f32 %v1078, %v1079
  %v1081 = vrot.slane %v1080, 2
  %v1082 = vadd.f32 %v1080, %v1081
  %v1083 = vrot.slane %v1082, 1
  %v1084 = vadd.f32 %v1082, %v1083
  %v1085 = vadd.f32 %v251, %v267
  %v1086 = vrot.slane %v1085, 4
  %v1087 = vadd.f32 %v1085, %v1086
  %v1088 = vrot.slane %v1087, 2
  %v1089 = vadd.f32 %v1087, %v1088
  %v1090 = vrot.slane %v1089, 1
  %v1091 = vadd.f32 %v1089, %v1090
  %v1092 = vadd.f32 %v252, %v268
  %v1093 = vrot.slane %v1092, 4
  %v1094 = vadd.f32 %v1092, %v1093
  %v1095 = vrot.slane %v1094, 2
  %v1096 = vadd.f32 %v1094, %v1095
  %v1097 = vrot.slane %v1096, 1
  %v1098 = vadd.f32 %v1096, %v1097
  %v1099 = vadd.f32 %v253, %v269
  %v1100 = vrot.slane %v1099, 4
  %v1101 = vadd.f32 %v1099, %v1100
  %v1102 = vrot.slane %v1101, 2
  %v1103 = vadd.f32 %v1101, %v1102
  %v1104 = vrot.slane %v1103, 1
  %v1105 = vadd.f32 %v1103, %v1104
  %v1106 = vadd.f32 %v254, %v270
  %v1107 = vrot.slane %v1106, 4
  %v1108 = vadd.f32 %v1106, %v1107
  %v1109 = vrot.slane %v1108, 2
  %v1110 = vadd.f32 %v1108, %v1109
  %v1111 = vrot.slane %v1110, 1
  %v1112 = vadd.f32 %v1110, %v1111
  %v1113 = vadd.f32 %v255, %v271
  %v1114 = vrot.slane %v1113, 4
  %v1115 = vadd.f32 %v1113, %v1114
  %v1116 = vrot.slane %v1115, 2
  %v1117 = vadd.f32 %v1115, %v1116
  %v1118 = vrot.slane %v1117, 1
  %v1119 = vadd.f32 %v1117, %v1118
  %v1120 = vadd.f32 %v256, %v272
  %v1121 = vrot.slane %v1120, 4
  %v1122 = vadd.f32 %v1120, %v1121
  %v1123 = vrot.slane %v1122, 2
  %v1124 = vadd.f32 %v1122, %v1123
  %v1125 = vrot.slane %v1124, 1
  %v1126 = vadd.f32 %v1124, %v1125
  %v1127 = vadd.f32 %v257, %v273
  %v1128 = vrot.slane %v1127, 4
  %v1129 = vadd.f32 %v1127, %v1128
  %v1130 = vrot.slane %v1129, 2
  %v1131 = vadd.f32 %v1129, %v1130
  %v1132 = vrot.slane %v1131, 1
  %v1133 = vadd.f32 %v1131, %v1132
  %v1134 = vadd.f32 %v258, %v274
  %v1135 = vrot.slane %v1134, 4
  %v1136 = vadd.f32 %v1134, %v1135
  %v1137 = vrot.slane %v1136, 2
  %v1138 = vadd.f32 %v1136, %v1137
  %v1139 = vrot.slane %v1138, 1
  %v1140 = vadd.f32 %v1138, %v1139
  %v1141 = vadd.f32 %v259, %v275
  %v1142 = vrot.slane %v1141, 4
  %v1143 = vadd.f32 %v1141, %v1142
  %v1144 = vrot.slane %v1143, 2
  %v1145 = vadd.f32 %v1143, %v1144
  %v1146 = vrot.slane %v1145, 1
  %v1147 = vadd.f32 %v1145, %v1146
  %v1148 = vadd.f32 %v260, %v276
  %v1149 = vrot.slane %v1148, 4
  %v1150 = vadd.f32 %v1148, %v1149
  %v1151 = vrot.slane %v1150, 2
  %v1152 = vadd.f32 %v1150, %v1151
  %v1153 = vrot.slane %v1152, 1
  %v1154 = vadd.f32 %v1152, %v1153
  %v1155 = vadd.f32 %v261, %v277
  %v1156 = vrot.slane %v1155, 4
  %v1157 = vadd.f32 %v1155, %v1156
  %v1158 = vrot.slane %v1157, 2
  %v1159 = vadd.f32 %v1157, %v1158
  %v1160 = vrot.slane %v1159, 1
  %v1161 = vadd.f32 %v1159, %v1160
  %v1162 = vadd.f32 %v262, %v278
  %v1163 = vrot.slane %v1162, 4
  %v1164 = vadd.f32 %v1162, %v1163
  %v1165 = vrot.slane %v1164, 2
  %v1166 = vadd.f32 %v1164, %v1165
  %v1167 = vrot.slane %v1166, 1
  %v1168 = vadd.f32 %v1166, %v1167
  %v1169 = vadd.f32 %v263, %v279
  %v1170 = vrot.slane %v1169, 4
  %v1171 = vadd.f32 %v1169, %v1170
  %v1172 = vrot.slane %v1171, 2
  %v1173 = vadd.f32 %v1171, %v1172
  %v1174 = vrot.slane %v1173, 1
  %v1175 = vadd.f32 %v1173, %v1174
  %v1176 = vld [vmem:[%s2] sm:$0xff]
  %v1177 = vld [vmem:[%s2 + $0x8] sm:$0xff]
  %v1178 = vld [vmem:[%s2 + $0x10] sm:$0xff]
  %v1179 = vld [vmem:[%s2 + $0x18] sm:$0xff]
  %v1180 = vld [vmem:[%s2 + $0x20] sm:$0xff]
  %v1181 = vld [vmem:[%s2 + $0x28] sm:$0xff]
  %v1182 = vld [vmem:[%s2 + $0x30] sm:$0xff]
  %v1183 = vld [vmem:[%s2 + $0x38] sm:$0xff]
  %v1184 = vld [vmem:[%s2 + $0x40] sm:$0xff]
  %v1185 = vld [vmem:[%s2 + $0x48] sm:$0xff]
  %v1186 = vld [vmem:[%s2 + $0x50] sm:$0xff]
  %v1187 = vld [vmem:[%s2 + $0x58] sm:$0xff]
  %v1188 = vld [vmem:[%s2 + $0x60] sm:$0xff]
  %v1189 = vld [vmem:[%s2 + $0x68] sm:$0xff]
  %v1190 = vld [vmem:[%s2 + $0x70] sm:$0xff]
  %v1191 = vld [vmem:[%s2 + $0x78] sm:$0xff]
  %v1192 = vld [vmem:[%s2 + $0x80] sm:$0xff]
  %v1193 = vld [vmem:[%s2 + $0x88] sm:$0xff]
  %v1194 = vld [vmem:[%s2 + $0x90] sm:$0xff]
  %v1195 = vld [vmem:[%s2 + $0x98] sm:$0xff]
  %v1196 = vld [vmem:[%s2 + $0xa0] sm:$0xff]
  %v1197 = vld [vmem:[%s2 + $0xa8] sm:$0xff]
  %v1198 = vld [vmem:[%s2 + $0xb0] sm:$0xff]
  %v1199 = vld [vmem:[%s2 + $0xb8] sm:$0xff]
  %v1200 = vld [vmem:[%s2 + $0xc0] sm:$0xff]
  %v1201 = vld [vmem:[%s2 + $0xc8] sm:$0xff]
  %v1202 = vld [vmem:[%s2 + $0xd0] sm:$0xff]
  %v1203 = vld [vmem:[%s2 + $0xd8] sm:$0xff]
  %v1204 = vld [vmem:[%s2 + $0xe0] sm:$0xff]
  %v1205 = vld [vmem:[%s2 + $0xe8] sm:$0xff]
  %v1206 = vld [vmem:[%s2 + $0xf0] sm:$0xff]
  %v1207 = vld [vmem:[%s2 + $0xf8] sm:$0xff]
  %v1208 = vld [vmem:[%s2 + $0x100] sm:$0xff]
  %v1209 = vld [vmem:[%s2 + $0x108] sm:$0xff]
  %v1210 = vld [vmem:[%s2 + $0x110] sm:$0xff]
  %v1211 = vld [vmem:[%s2 + $0x118] sm:$0xff]
  %v1212 = vld [vmem:[%s2 + $0x120] sm:$0xff]
  %v1213 = vld [vmem:[%s2 + $0x128] sm:$0xff]
  %v1214 = vld [vmem:[%s2 + $0x130] sm:$0xff]
  %v1215 = vld [vmem:[%s2 + $0x138] sm:$0xff]
  %v1216 = vld [vmem:[%s2 + $0x140] sm:$0xff]
  %v1217 = vld [vmem:[%s2 + $0x148] sm:$0xff]
  %v1218 = vld [vmem:[%s2 + $0x150] sm:$0xff]
  %v1219 = vld [vmem:[%s2 + $0x158] sm:$0xff]
  %v1220 = vld [vmem:[%s2 + $0x160] sm:$0xff]
  %v1221 = vld [vmem:[%s2 + $0x168] sm:$0xff]
  %v1222 = vld [vmem:[%s2 + $0x170] sm:$0xff]
  %v1223 = vld [vmem:[%s2 + $0x178] sm:$0xff]
  %v1224 = vld [vmem:[%s2 + $0x180] sm:$0xff]
  %v1225 = vld [vmem:[%s2 + $0x188] sm:$0xff]
  %v1226 = vld [vmem:[%s2 + $0x190] sm:$0xff]
  %v1227 = vld [vmem:[%s2 + $0x198] sm:$0xff]
  %v1228 = vld [vmem:[%s2 + $0x1a0] sm:$0xff]
  %v1229 = vld [vmem:[%s2 + $0x1a8] sm:$0xff]
  %v1230 = vld [vmem:[%s2 + $0x1b0] sm:$0xff]
  %v1231 = vld [vmem:[%s2 + $0x1b8] sm:$0xff]
  %v1232 = vld [vmem:[%s2 + $0x1c0] sm:$0xff]
  %v1233 = vld [vmem:[%s2 + $0x1c8] sm:$0xff]
  %v1234 = vld [vmem:[%s2 + $0x1d0] sm:$0xff]
  %v1235 = vld [vmem:[%s2 + $0x1d8] sm:$0xff]
  %v1236 = vld [vmem:[%s2 + $0x1e0] sm:$0xff]
  %v1237 = vld [vmem:[%s2 + $0x1e8] sm:$0xff]
  %v1238 = vld [vmem:[%s2 + $0x1f0] sm:$0xff]
  %v1239 = vld [vmem:[%s2 + $0x1f8] sm:$0xff]
  %v1240 = vld [vmem:[%s2 + $0x200] sm:$0xff]
  %v1241 = vld [vmem:[%s2 + $0x208] sm:$0xff]
  %v1242 = vld [vmem:[%s2 + $0x210] sm:$0xff]
  %v1243 = vld [vmem:[%s2 + $0x218] sm:$0xff]
  %v1244 = vld [vmem:[%s2 + $0x220] sm:$0xff]
  %v1245 = vld [vmem:[%s2 + $0x228] sm:$0xff]
  %v1246 = vld [vmem:[%s2 + $0x230] sm:$0xff]
  %v1247 = vld [vmem:[%s2 + $0x238] sm:$0xff]
  %v1248 = vld [vmem:[%s2 + $0x240] sm:$0xff]
  %v1249 = vld [vmem:[%s2 + $0x248] sm:$0xff]
  %v1250 = vld [vmem:[%s2 + $0x250] sm:$0xff]
  %v1251 = vld [vmem:[%s2 + $0x258] sm:$0xff]
  %v1252 = vld [vmem:[%s2 + $0x260] sm:$0xff]
  %v1253 = vld [vmem:[%s2 + $0x268] sm:$0xff]
  %v1254 = vld [vmem:[%s2 + $0x270] sm:$0xff]
  %v1255 = vld [vmem:[%s2 + $0x278] sm:$0xff]
  %v1256 = vld [vmem:[%s2 + $0x280] sm:$0xff]
  %v1257 = vld [vmem:[%s2 + $0x288] sm:$0xff]
  %v1258 = vld [vmem:[%s2 + $0x290] sm:$0xff]
  %v1259 = vld [vmem:[%s2 + $0x298] sm:$0xff]
  %v1260 = vld [vmem:[%s2 + $0x2a0] sm:$0xff]
  %v1261 = vld [vmem:[%s2 + $0x2a8] sm:$0xff]
  %v1262 = vld [vmem:[%s2 + $0x2b0] sm:$0xff]
  %v1263 = vld [vmem:[%s2 + $0x2b8] sm:$0xff]
  %v1264 = vld [vmem:[%s2 + $0x2c0] sm:$0xff]
  %v1265 = vld [vmem:[%s2 + $0x2c8] sm:$0xff]
  %v1266 = vld [vmem:[%s2 + $0x2d0] sm:$0xff]
  %v1267 = vld [vmem:[%s2 + $0x2d8] sm:$0xff]
  %v1268 = vld [vmem:[%s2 + $0x2e0] sm:$0xff]
  %v1269 = vld [vmem:[%s2 + $0x2e8] sm:$0xff]
  %v1270 = vld [vmem:[%s2 + $0x2f0] sm:$0xff]
  %v1271 = vld [vmem:[%s2 + $0x2f8] sm:$0xff]
  %v1272 = vld [vmem:[%s2 + $0x300] sm:$0xff]
  %v1273 = vld [vmem:[%s2 + $0x308] sm:$0xff]
  %v1274 = vld [vmem:[%s2 + $0x310] sm:$0xff]
  %v1275 = vld [vmem:[%s2 + $0x318] sm:$0xff]
  %v1276 = vld [vmem:[%s2 + $0x320] sm:$0xff]
  %v1277 = vld [vmem:[%s2 + $0x328] sm:$0xff]
  %v1278 = vld [vmem:[%s2 + $0x330] sm:$0xff]
  %v1279 = vld [vmem:[%s2 + $0x338] sm:$0xff]
  %v1280 = vld [vmem:[%s2 + $0x340] sm:$0xff]
  %v1281 = vld [vmem:[%s2 + $0x348] sm:$0xff]
  %v1282 = vld [vmem:[%s2 + $0x350] sm:$0xff]
  %v1283 = vld [vmem:[%s2 + $0x358] sm:$0xff]
  %v1284 = vld [vmem:[%s2 + $0x360] sm:$0xff]
  %v1285 = vld [vmem:[%s2 + $0x368] sm:$0xff]
  %v1286 = vld [vmem:[%s2 + $0x370] sm:$0xff]
  %v1287 = vld [vmem:[%s2 + $0x378] sm:$0xff]
  %v1288 = vld [vmem:[%s2 + $0x380] sm:$0xff]
  %v1289 = vld [vmem:[%s2 + $0x388] sm:$0xff]
  %v1290 = vld [vmem:[%s2 + $0x390] sm:$0xff]
  %v1291 = vld [vmem:[%s2 + $0x398] sm:$0xff]
  %v1292 = vld [vmem:[%s2 + $0x3a0] sm:$0xff]
  %v1293 = vld [vmem:[%s2 + $0x3a8] sm:$0xff]
  %v1294 = vld [vmem:[%s2 + $0x3b0] sm:$0xff]
  %v1295 = vld [vmem:[%s2 + $0x3b8] sm:$0xff]
  %v1296 = vld [vmem:[%s2 + $0x3c0] sm:$0xff]
  %v1297 = vld [vmem:[%s2 + $0x3c8] sm:$0xff]
  %v1298 = vld [vmem:[%s2 + $0x3d0] sm:$0xff]
  %v1299 = vld [vmem:[%s2 + $0x3d8] sm:$0xff]
  %v1300 = vld [vmem:[%s2 + $0x3e0] sm:$0xff]
  %v1301 = vld [vmem:[%s2 + $0x3e8] sm:$0xff]
  %v1302 = vld [vmem:[%s2 + $0x3f0] sm:$0xff]
  %v1303 = vld [vmem:[%s2 + $0x3f8] sm:$0xff]
  %v1304 = vld [vmem:[%s2 + $0x400] sm:$0xff]
  %v1305 = vld [vmem:[%s2 + $0x408] sm:$0xff]
  %v1306 = vld [vmem:[%s2 + $0x410] sm:$0xff]
  %v1307 = vld [vmem:[%s2 + $0x418] sm:$0xff]
  %v1308 = vld [vmem:[%s2 + $0x420] sm:$0xff]
  %v1309 = vld [vmem:[%s2 + $0x428] sm:$0xff]
  %v1310 = vld [vmem:[%s2 + $0x430] sm:$0xff]
  %v1311 = vld [vmem:[%s2 + $0x438] sm:$0xff]
  %v1312 = vld [vmem:[%s2 + $0x440] sm:$0xff]
  %v1313 = vld [vmem:[%s2 + $0x448] sm:$0xff]
  %v1314 = vld [vmem:[%s2 + $0x450] sm:$0xff]
  %v1315 = vld [vmem:[%s2 + $0x458] sm:$0xff]
  %v1316 = vld [vmem:[%s2 + $0x460] sm:$0xff]
  %v1317 = vld [vmem:[%s2 + $0x468] sm:$0xff]
  %v1318 = vld [vmem:[%s2 + $0x470] sm:$0xff]
  %v1319 = vld [vmem:[%s2 + $0x478] sm:$0xff]
  %v1320 = vld [vmem:[%s2 + $0x480] sm:$0xff]
  %v1321 = vld [vmem:[%s2 + $0x488] sm:$0xff]
  %v1322 = vld [vmem:[%s2 + $0x490] sm:$0xff]
  %v1323 = vld [vmem:[%s2 + $0x498] sm:$0xff]
  %v1324 = vld [vmem:[%s2 + $0x4a0] sm:$0xff]
  %v1325 = vld [vmem:[%s2 + $0x4a8] sm:$0xff]
  %v1326 = vld [vmem:[%s2 + $0x4b0] sm:$0xff]
  %v1327 = vld [vmem:[%s2 + $0x4b8] sm:$0xff]
  %v1328 = vld [vmem:[%s2 + $0x4c0] sm:$0xff]
  %v1329 = vld [vmem:[%s2 + $0x4c8] sm:$0xff]
  %v1330 = vld [vmem:[%s2 + $0x4d0] sm:$0xff]
  %v1331 = vld [vmem:[%s2 + $0x4d8] sm:$0xff]
  %v1332 = vld [vmem:[%s2 + $0x4e0] sm:$0xff]
  %v1333 = vld [vmem:[%s2 + $0x4e8] sm:$0xff]
  %v1334 = vld [vmem:[%s2 + $0x4f0] sm:$0xff]
  %v1335 = vld [vmem:[%s2 + $0x4f8] sm:$0xff]
  %v1336 = vld [vmem:[%s2 + $0x500] sm:$0xff]
  %v1337 = vld [vmem:[%s2 + $0x508] sm:$0xff]
  %v1338 = vld [vmem:[%s2 + $0x510] sm:$0xff]
  %v1339 = vld [vmem:[%s2 + $0x518] sm:$0xff]
  %v1340 = vld [vmem:[%s2 + $0x520] sm:$0xff]
  %v1341 = vld [vmem:[%s2 + $0x528] sm:$0xff]
  %v1342 = vld [vmem:[%s2 + $0x530] sm:$0xff]
  %v1343 = vld [vmem:[%s2 + $0x538] sm:$0xff]
  %v1344 = vld [vmem:[%s2 + $0x540] sm:$0xff]
  %v1345 = vld [vmem:[%s2 + $0x548] sm:$0xff]
  %v1346 = vld [vmem:[%s2 + $0x550] sm:$0xff]
  %v1347 = vld [vmem:[%s2 + $0x558] sm:$0xff]
  %v1348 = vld [vmem:[%s2 + $0x560] sm:$0xff]
  %v1349 = vld [vmem:[%s2 + $0x568] sm:$0xff]
  %v1350 = vld [vmem:[%s2 + $0x570] sm:$0xff]
  %v1351 = vld [vmem:[%s2 + $0x578] sm:$0xff]
  %v1352 = vld [vmem:[%s2 + $0x580] sm:$0xff]
  %v1353 = vld [vmem:[%s2 + $0x588] sm:$0xff]
  %v1354 = vld [vmem:[%s2 + $0x590] sm:$0xff]
  %v1355 = vld [vmem:[%s2 + $0x598] sm:$0xff]
  %v1356 = vld [vmem:[%s2 + $0x5a0] sm:$0xff]
  %v1357 = vld [vmem:[%s2 + $0x5a8] sm:$0xff]
  %v1358 = vld [vmem:[%s2 + $0x5b0] sm:$0xff]
  %v1359 = vld [vmem:[%s2 + $0x5b8] sm:$0xff]
  %v1360 = vld [vmem:[%s2 + $0x5c0] sm:$0xff]
  %v1361 = vld [vmem:[%s2 + $0x5c8] sm:$0xff]
  %v1362 = vld [vmem:[%s2 + $0x5d0] sm:$0xff]
  %v1363 = vld [vmem:[%s2 + $0x5d8] sm:$0xff]
  %v1364 = vld [vmem:[%s2 + $0x5e0] sm:$0xff]
  %v1365 = vld [vmem:[%s2 + $0x5e8] sm:$0xff]
  %v1366 = vld [vmem:[%s2 + $0x5f0] sm:$0xff]
  %v1367 = vld [vmem:[%s2 + $0x5f8] sm:$0xff]
  %v1368 = vld [vmem:[%s2 + $0x600] sm:$0xff]
  %v1369 = vld [vmem:[%s2 + $0x608] sm:$0xff]
  %v1370 = vld [vmem:[%s2 + $0x610] sm:$0xff]
  %v1371 = vld [vmem:[%s2 + $0x618] sm:$0xff]
  %v1372 = vld [vmem:[%s2 + $0x620] sm:$0xff]
  %v1373 = vld [vmem:[%s2 + $0x628] sm:$0xff]
  %v1374 = vld [vmem:[%s2 + $0x630] sm:$0xff]
  %v1375 = vld [vmem:[%s2 + $0x638] sm:$0xff]
  %v1376 = vld [vmem:[%s2 + $0x640] sm:$0xff]
  %v1377 = vld [vmem:[%s2 + $0x648] sm:$0xff]
  %v1378 = vld [vmem:[%s2 + $0x650] sm:$0xff]
  %v1379 = vld [vmem:[%s2 + $0x658] sm:$0xff]
  %v1380 = vld [vmem:[%s2 + $0x660] sm:$0xff]
  %v1381 = vld [vmem:[%s2 + $0x668] sm:$0xff]
  %v1382 = vld [vmem:[%s2 + $0x670] sm:$0xff]
  %v1383 = vld [vmem:[%s2 + $0x678] sm:$0xff]
  %v1384 = vld [vmem:[%s2 + $0x680] sm:$0xff]
  %v1385 = vld [vmem:[%s2 + $0x688] sm:$0xff]
  %v1386 = vld [vmem:[%s2 + $0x690] sm:$0xff]
  %v1387 = vld [vmem:[%s2 + $0x698] sm:$0xff]
  %v1388 = vld [vmem:[%s2 + $0x6a0] sm:$0xff]
  %v1389 = vld [vmem:[%s2 + $0x6a8] sm:$0xff]
  %v1390 = vld [vmem:[%s2 + $0x6b0] sm:$0xff]
  %v1391 = vld [vmem:[%s2 + $0x6b8] sm:$0xff]
  %v1392 = vld [vmem:[%s2 + $0x6c0] sm:$0xff]
  %v1393 = vld [vmem:[%s2 + $0x6c8] sm:$0xff]
  %v1394 = vld [vmem:[%s2 + $0x6d0] sm:$0xff]
  %v1395 = vld [vmem:[%s2 + $0x6d8] sm:$0xff]
  %v1396 = vld [vmem:[%s2 + $0x6e0] sm:$0xff]
  %v1397 = vld [vmem:[%s2 + $0x6e8] sm:$0xff]
  %v1398 = vld [vmem:[%s2 + $0x6f0] sm:$0xff]
  %v1399 = vld [vmem:[%s2 + $0x6f8] sm:$0xff]
  %v1400 = vld [vmem:[%s2 + $0x700] sm:$0xff]
  %v1401 = vld [vmem:[%s2 + $0x708] sm:$0xff]
  %v1402 = vld [vmem:[%s2 + $0x710] sm:$0xff]
  %v1403 = vld [vmem:[%s2 + $0x718] sm:$0xff]
  %v1404 = vld [vmem:[%s2 + $0x720] sm:$0xff]
  %v1405 = vld [vmem:[%s2 + $0x728] sm:$0xff]
  %v1406 = vld [vmem:[%s2 + $0x730] sm:$0xff]
  %v1407 = vld [vmem:[%s2 + $0x738] sm:$0xff]
  %v1408 = vld [vmem:[%s2 + $0x740] sm:$0xff]
  %v1409 = vld [vmem:[%s2 + $0x748] sm:$0xff]
  %v1410 = vld [vmem:[%s2 + $0x750] sm:$0xff]
  %v1411 = vld [vmem:[%s2 + $0x758] sm:$0xff]
  %v1412 = vld [vmem:[%s2 + $0x760] sm:$0xff]
  %v1413 = vld [vmem:[%s2 + $0x768] sm:$0xff]
  %v1414 = vld [vmem:[%s2 + $0x770] sm:$0xff]
  %v1415 = vld [vmem:[%s2 + $0x778] sm:$0xff]
  %v1416 = vld [vmem:[%s2 + $0x780] sm:$0xff]
  %v1417 = vld [vmem:[%s2 + $0x788] sm:$0xff]
  %v1418 = vld [vmem:[%s2 + $0x790] sm:$0xff]
  %v1419 = vld [vmem:[%s2 + $0x798] sm:$0xff]
  %v1420 = vld [vmem:[%s2 + $0x7a0] sm:$0xff]
  %v1421 = vld [vmem:[%s2 + $0x7a8] sm:$0xff]
  %v1422 = vld [vmem:[%s2 + $0x7b0] sm:$0xff]
  %v1423 = vld [vmem:[%s2 + $0x7b8] sm:$0xff]
  %v1424 = vld [vmem:[%s2 + $0x7c0] sm:$0xff]
  %v1425 = vld [vmem:[%s2 + $0x7c8] sm:$0xff]
  %v1426 = vld [vmem:[%s2 + $0x7d0] sm:$0xff]
  %v1427 = vld [vmem:[%s2 + $0x7d8] sm:$0xff]
  %v1428 = vld [vmem:[%s2 + $0x7e0] sm:$0xff]
  %v1429 = vld [vmem:[%s2 + $0x7e8] sm:$0xff]
  %v1430 = vld [vmem:[%s2 + $0x7f0] sm:$0xff]
  %v1431 = vld [vmem:[%s2 + $0x7f8] sm:$0xff]
  %v1432 = vld [vmem:[%s3] sm:$0x1]
  %v1434 = vlaneseq
  %v1435 = vshrl.u32 %v1434, 7
  %v1436 = vsub.s32 0, %v1435
  %v1437 = vrot.slane %v1432, %v1436
  %vm1567 = vcmask 1041409
  %v1568 = vsel %vm1567, %v398, %v286
  %vm1569 = vcmask 1042434
  %v1570 = vsel %vm1569, %v510, %v1568
  %vm1571 = vcmask 1043459
  %v1572 = vsel %vm1571, %v622, %v1570
  %vm1573 = vcmask 1044484
  %v1574 = vsel %vm1573, %v734, %v1572
  %vm1575 = vcmask 1045509
  %v1576 = vsel %vm1575, %v846, %v1574
  %vm1577 = vcmask 1046534
  %v1578 = vsel %vm1577, %v958, %v1576
  %vm1579 = vcmask 1047559
  %v1580 = vsel %vm1579, %v1070, %v1578
  %v1581 = vsel %vm1567, %v405, %v293
  %v1582 = vsel %vm1569, %v517, %v1581
  %v1583 = vsel %vm1571, %v629, %v1582
  %v1584 = vsel %vm1573, %v741, %v1583
  %v1585 = vsel %vm1575, %v853, %v1584
  %v1586 = vsel %vm1577, %v965, %v1585
  %v1587 = vsel %vm1579, %v1077, %v1586
  %v1588 = vsel %vm1567, %v412, %v300
  %v1589 = vsel %vm1569, %v524, %v1588
  %v1590 = vsel %vm1571, %v636, %v1589
  %v1591 = vsel %vm1573, %v748, %v1590
  %v1592 = vsel %vm1575, %v860, %v1591
  %v1593 = vsel %vm1577, %v972, %v1592
  %v1594 = vsel %vm1579, %v1084, %v1593
  %v1595 = vsel %vm1567, %v419, %v307
  %v1596 = vsel %vm1569, %v531, %v1595
  %v1597 = vsel %vm1571, %v643, %v1596
  %v1598 = vsel %vm1573, %v755, %v1597
  %v1599 = vsel %vm1575, %v867, %v1598
  %v1600 = vsel %vm1577, %v979, %v1599
  %v1601 = vsel %vm1579, %v1091, %v1600
  %v1602 = vsel %vm1567, %v426, %v314
  %v1603 = vsel %vm1569, %v538, %v1602
  %v1604 = vsel %vm1571, %v650, %v1603
  %v1605 = vsel %vm1573, %v762, %v1604
  %v1606 = vsel %vm1575, %v874, %v1605
  %v1607 = vsel %vm1577, %v986, %v1606
  %v1608 = vsel %vm1579, %v1098, %v1607
  %v1609 = vsel %vm1567, %v433, %v321
  %v1610 = vsel %vm1569, %v545, %v1609
  %v1611 = vsel %vm1571, %v657, %v1610
  %v1612 = vsel %vm1573, %v769, %v1611
  %v1613 = vsel %vm1575, %v881, %v1612
  %v1614 = vsel %vm1577, %v993, %v1613
  %v1615 = vsel %vm1579, %v1105, %v1614
  %v1616 = vsel %vm1567, %v440, %v328
  %v1617 = vsel %vm1569, %v552, %v1616
  %v1618 = vsel %vm1571, %v664, %v1617
  %v1619 = vsel %vm1573, %v776, %v1618
  %v1620 = vsel %vm1575, %v888, %v1619
  %v1621 = vsel %vm1577, %v1000, %v1620
  %v1622 = vsel %vm1579, %v1112, %v1621
  %v1623 = vsel %vm1567, %v447, %v335
  %v1624 = vsel %vm1569, %v559, %v1623
  %v1625 = vsel %vm1571, %v671, %v1624
  %v1626 = vsel %vm1573, %v783, %v1625
  %v1627 = vsel %vm1575, %v895, %v1626
  %v1628 = vsel %vm1577, %v1007, %v1627
  %v1629 = vsel %vm1579, %v1119, %v1628
  %v1630 = vsel %vm1567, %v454, %v342
  %v1631 = vsel %vm1569, %v566, %v1630
  %v1632 = vsel %vm1571, %v678, %v1631
  %v1633 = vsel %vm1573, %v790, %v1632
  %v1634 = vsel %vm1575, %v902, %v1633
  %v1635 = vsel %vm1577, %v1014, %v1634
  %v1636 = vsel %vm1579, %v1126, %v1635
  %v1637 = vsel %vm1567, %v461, %v349
  %v1638 = vsel %vm1569, %v573, %v1637
  %v1639 = vsel %vm1571, %v685, %v1638
  %v1640 = vsel %vm1573, %v797, %v1639
  %v1641 = vsel %vm1575, %v909, %v1640
  %v1642 = vsel %vm1577, %v1021, %v1641
  %v1643 = vsel %vm1579, %v1133, %v1642
  %v1644 = vsel %vm1567, %v468, %v356
  %v1645 = vsel %vm1569, %v580, %v1644
  %v1646 = vsel %vm1571, %v692, %v1645
  %v1647 = vsel %vm1573, %v804, %v1646
  %v1648 = vsel %vm1575, %v916, %v1647
  %v1649 = vsel %vm1577, %v1028, %v1648
  %v1650 = vsel %vm1579, %v1140, %v1649
  %v1651 = vsel %vm1567, %v475, %v363
  %v1652 = vsel %vm1569, %v587, %v1651
  %v1653 = vsel %vm1571, %v699, %v1652
  %v1654 = vsel %vm1573, %v811, %v1653
  %v1655 = vsel %vm1575, %v923, %v1654
  %v1656 = vsel %vm1577, %v1035, %v1655
  %v1657 = vsel %vm1579, %v1147, %v1656
  %v1658 = vsel %vm1567, %v482, %v370
  %v1659 = vsel %vm1569, %v594, %v1658
  %v1660 = vsel %vm1571, %v706, %v1659
  %v1661 = vsel %vm1573, %v818, %v1660
  %v1662 = vsel %vm1575, %v930, %v1661
  %v1663 = vsel %vm1577, %v1042, %v1662
  %v1664 = vsel %vm1579, %v1154, %v1663
  %v1665 = vsel %vm1567, %v489, %v377
  %v1666 = vsel %vm1569, %v601, %v1665
  %v1667 = vsel %vm1571, %v713, %v1666
  %v1668 = vsel %vm1573, %v825, %v1667
  %v1669 = vsel %vm1575, %v937, %v1668
  %v1670 = vsel %vm1577, %v1049, %v1669
  %v1671 = vsel %vm1579, %v1161, %v1670
  %v1672 = vsel %vm1567, %v496, %v384
  %v1673 = vsel %vm1569, %v608, %v1672
  %v1674 = vsel %vm1571, %v720, %v1673
  %v1675 = vsel %vm1573, %v832, %v1674
  %v1676 = vsel %vm1575, %v944, %v1675
  %v1677 = vsel %vm1577, %v1056, %v1676
  %v1678 = vsel %vm1579, %v1168, %v1677
  %v1679 = vsel %vm1567, %v503, %v391
  %v1680 = vsel %vm1569, %v615, %v1679
  %v1681 = vsel %vm1571, %v727, %v1680
  %v1682 = vsel %vm1573, %v839, %v1681
  %v1683 = vsel %vm1575, %v951, %v1682
  %v1684 = vsel %vm1577, %v1063, %v1683
  %v1685 = vsel %vm1579, %v1175, %v1684
  %1702 = vmatprep.subr.mxu0 0.0
  %1703 = vmatpush1.msra.mxu0 %v1191
  %1704 = vmatprep.subr.mxu0 0.0
  %1705 = vmatpush1.msra.mxu0 %v1190
  %1706 = vmatprep.subr.mxu0 0.0
  %1707 = vmatpush1.msra.mxu0 %v1189
  %1708 = vmatprep.subr.mxu0 0.0
  %1709 = vmatpush1.msra.mxu0 %v1188
  %1710 = vmatprep.subr.mxu0 0.0
  %1711 = vmatpush1.msra.mxu0 %v1187
  %1712 = vmatprep.subr.mxu0 0.0
  %1713 = vmatpush1.msra.mxu0 %v1186
  %1714 = vmatprep.subr.mxu0 0.0
  %1715 = vmatpush1.msra.mxu0 %v1185
  %1716 = vmatprep.subr.mxu0 0.0
  %1717 = vmatpush1.msra.mxu0 %v1184
  %1718 = vmatprep.subr.mxu0 0.0
  %1719 = vmatpush1.msra.mxu0 %v1183
  %1720 = vmatprep.subr.mxu0 0.0
  %1721 = vmatpush1.msra.mxu0 %v1182
  %1722 = vmatprep.subr.mxu0 0.0
  %1723 = vmatpush1.msra.mxu0 %v1181
  %1724 = vmatprep.subr.mxu0 0.0
  %1725 = vmatpush1.msra.mxu0 %v1180
  %1726 = vmatprep.subr.mxu0 0.0
  %1727 = vmatpush1.msra.mxu0 %v1179
  %1728 = vmatprep.subr.mxu0 0.0
  %1729 = vmatpush1.msra.mxu0 %v1178
  %1730 = vmatprep.subr.mxu0 0.0
  %1731 = vmatpush1.msra.mxu0 %v1177
  %1732 = vmatprep.subr.mxu0 0.0
  %1733 = vmatpush1.msra.mxu0 %v1176
  %1734 = vmatprep.subr.mxu0 0.0
  %1735 = vmatpush2.msra.mxu0 %v1207
  %1736 = vmatprep.subr.mxu0 0.0
  %1737 = vmatpush2.msra.mxu0 %v1206
  %1738 = vmatprep.subr.mxu0 0.0
  %1739 = vmatpush2.msra.mxu0 %v1205
  %1740 = vmatprep.subr.mxu0 0.0
  %1741 = vmatpush2.msra.mxu0 %v1204
  %1742 = vmatprep.subr.mxu0 0.0
  %1743 = vmatpush2.msra.mxu0 %v1203
  %1744 = vmatprep.subr.mxu0 0.0
  %1745 = vmatpush2.msra.mxu0 %v1202
  %1746 = vmatprep.subr.mxu0 0.0
  %1747 = vmatpush2.msra.mxu0 %v1201
  %1748 = vmatprep.subr.mxu0 0.0
  %1749 = vmatpush2.msra.mxu0 %v1200
  %1750 = vmatprep.subr.mxu0 0.0
  %1751 = vmatpush2.msra.mxu0 %v1199
  %1752 = vmatprep.subr.mxu0 0.0
  %1753 = vmatpush2.msra.mxu0 %v1198
  %1754 = vmatprep.subr.mxu0 0.0
  %1755 = vmatpush2.msra.mxu0 %v1197
  %1756 = vmatprep.subr.mxu0 0.0
  %1757 = vmatpush2.msra.mxu0 %v1196
  %1758 = vmatprep.subr.mxu0 0.0
  %1759 = vmatpush2.msra.mxu0 %v1195
  %1760 = vmatprep.subr.mxu0 0.0
  %1761 = vmatpush2.msra.mxu0 %v1194
  %1762 = vmatprep.subr.mxu0 0.0
  %1763 = vmatpush2.msra.mxu0 %v1193
  %1764 = vmatprep.subr.mxu0 0.0
  %1765 = vmatpush2.msra.mxu0 %v1192
  %1766 = vmatprep.mubr.f32.mxu0 %v1587
  %1767 = vmatmul.mubr.f32.gmra.mxu0 %v1580
  %v1768 = vpop.f32.mrf.mxu0
  %v1769 = vadd.f32 %v1437, %v1768
  %v1770 = vpop.f32.mrf.mxu0
  %1771 = vdwg.mxu0
  %1772 = vmatprep.subr.mxu0 0.0
  %1773 = vmatpush1.msra.mxu0 %v1223
  %1774 = vmatprep.subr.mxu0 0.0
  %1775 = vmatpush1.msra.mxu0 %v1222
  %1776 = vmatprep.subr.mxu0 0.0
  %1777 = vmatpush1.msra.mxu0 %v1221
  %1778 = vmatprep.subr.mxu0 0.0
  %1779 = vmatpush1.msra.mxu0 %v1220
  %1780 = vmatprep.subr.mxu0 0.0
  %1781 = vmatpush1.msra.mxu0 %v1219
  %1782 = vmatprep.subr.mxu0 0.0
  %1783 = vmatpush1.msra.mxu0 %v1218
  %1784 = vmatprep.subr.mxu0 0.0
  %1785 = vmatpush1.msra.mxu0 %v1217
  %1786 = vmatprep.subr.mxu0 0.0
  %1787 = vmatpush1.msra.mxu0 %v1216
  %1788 = vmatprep.subr.mxu0 0.0
  %1789 = vmatpush1.msra.mxu0 %v1215
  %1790 = vmatprep.subr.mxu0 0.0
  %1791 = vmatpush1.msra.mxu0 %v1214
  %1792 = vmatprep.subr.mxu0 0.0
  %1793 = vmatpush1.msra.mxu0 %v1213
  %1794 = vmatprep.subr.mxu0 0.0
  %1795 = vmatpush1.msra.mxu0 %v1212
  %1796 = vmatprep.subr.mxu0 0.0
  %1797 = vmatpush1.msra.mxu0 %v1211
  %1798 = vmatprep.subr.mxu0 0.0
  %1799 = vmatpush1.msra.mxu0 %v1210
  %1800 = vmatprep.subr.mxu0 0.0
  %1801 = vmatpush1.msra.mxu0 %v1209
  %1802 = vmatprep.subr.mxu0 0.0
  %1803 = vmatpush1.msra.mxu0 %v1208
  %1804 = vmatprep.subr.mxu0 0.0
  %1805 = vmatpush2.msra.mxu0 %v1239
  %1806 = vmatprep.subr.mxu0 0.0
  %1807 = vmatpush2.msra.mxu0 %v1238
  %1808 = vmatprep.subr.mxu0 0.0
  %1809 = vmatpush2.msra.mxu0 %v1237
  %1810 = vmatprep.subr.mxu0 0.0
  %1811 = vmatpush2.msra.mxu0 %v1236
  %1812 = vmatprep.subr.mxu0 0.0
  %1813 = vmatpush2.msra.mxu0 %v1235
  %1814 = vmatprep.subr.mxu0 0.0
  %1815 = vmatpush2.msra.mxu0 %v1234
  %1816 = vmatprep.subr.mxu0 0.0
  %1817 = vmatpush2.msra.mxu0 %v1233
  %1818 = vmatprep.subr.mxu0 0.0
  %1819 = vmatpush2.msra.mxu0 %v1232
  %1820 = vmatprep.subr.mxu0 0.0
  %1821 = vmatpush2.msra.mxu0 %v1231
  %1822 = vmatprep.subr.mxu0 0.0
  %1823 = vmatpush2.msra.mxu0 %v1230
  %1824 = vmatprep.subr.mxu0 0.0
  %1825 = vmatpush2.msra.mxu0 %v1229
  %1826 = vmatprep.subr.mxu0 0.0
  %1827 = vmatpush2.msra.mxu0 %v1228
  %1828 = vmatprep.subr.mxu0 0.0
  %1829 = vmatpush2.msra.mxu0 %v1227
  %1830 = vmatprep.subr.mxu0 0.0
  %1831 = vmatpush2.msra.mxu0 %v1226
  %1832 = vmatprep.subr.mxu0 0.0
  %1833 = vmatpush2.msra.mxu0 %v1225
  %1834 = vmatprep.subr.mxu0 0.0
  %1835 = vmatpush2.msra.mxu0 %v1224
  %1836 = vmatprep.mubr.f32.mxu0 %v1601
  %1837 = vmatmul.mubr.f32.gmra.mxu0 %v1594
  %v1838 = vpop.f32.mrf.mxu0
  %v1839 = vadd.f32 %v1769, %v1838
  %v1840 = vpop.f32.mrf.mxu0
  %1841 = vdwg.mxu0
  %1842 = vmatprep.subr.mxu0 0.0
  %1843 = vmatpush1.msra.mxu0 %v1255
  %1844 = vmatprep.subr.mxu0 0.0
  %1845 = vmatpush1.msra.mxu0 %v1254
  %1846 = vmatprep.subr.mxu0 0.0
  %1847 = vmatpush1.msra.mxu0 %v1253
  %1848 = vmatprep.subr.mxu0 0.0
  %1849 = vmatpush1.msra.mxu0 %v1252
  %1850 = vmatprep.subr.mxu0 0.0
  %1851 = vmatpush1.msra.mxu0 %v1251
  %1852 = vmatprep.subr.mxu0 0.0
  %1853 = vmatpush1.msra.mxu0 %v1250
  %1854 = vmatprep.subr.mxu0 0.0
  %1855 = vmatpush1.msra.mxu0 %v1249
  %1856 = vmatprep.subr.mxu0 0.0
  %1857 = vmatpush1.msra.mxu0 %v1248
  %1858 = vmatprep.subr.mxu0 0.0
  %1859 = vmatpush1.msra.mxu0 %v1247
  %1860 = vmatprep.subr.mxu0 0.0
  %1861 = vmatpush1.msra.mxu0 %v1246
  %1862 = vmatprep.subr.mxu0 0.0
  %1863 = vmatpush1.msra.mxu0 %v1245
  %1864 = vmatprep.subr.mxu0 0.0
  %1865 = vmatpush1.msra.mxu0 %v1244
  %1866 = vmatprep.subr.mxu0 0.0
  %1867 = vmatpush1.msra.mxu0 %v1243
  %1868 = vmatprep.subr.mxu0 0.0
  %1869 = vmatpush1.msra.mxu0 %v1242
  %1870 = vmatprep.subr.mxu0 0.0
  %1871 = vmatpush1.msra.mxu0 %v1241
  %1872 = vmatprep.subr.mxu0 0.0
  %1873 = vmatpush1.msra.mxu0 %v1240
  %1874 = vmatprep.subr.mxu0 0.0
  %1875 = vmatpush2.msra.mxu0 %v1271
  %1876 = vmatprep.subr.mxu0 0.0
  %1877 = vmatpush2.msra.mxu0 %v1270
  %1878 = vmatprep.subr.mxu0 0.0
  %1879 = vmatpush2.msra.mxu0 %v1269
  %1880 = vmatprep.subr.mxu0 0.0
  %1881 = vmatpush2.msra.mxu0 %v1268
  %1882 = vmatprep.subr.mxu0 0.0
  %1883 = vmatpush2.msra.mxu0 %v1267
  %1884 = vmatprep.subr.mxu0 0.0
  %1885 = vmatpush2.msra.mxu0 %v1266
  %1886 = vmatprep.subr.mxu0 0.0
  %1887 = vmatpush2.msra.mxu0 %v1265
  %1888 = vmatprep.subr.mxu0 0.0
  %1889 = vmatpush2.msra.mxu0 %v1264
  %1890 = vmatprep.subr.mxu0 0.0
  %1891 = vmatpush2.msra.mxu0 %v1263
  %1892 = vmatprep.subr.mxu0 0.0
  %1893 = vmatpush2.msra.mxu0 %v1262
  %1894 = vmatprep.subr.mxu0 0.0
  %1895 = vmatpush2.msra.mxu0 %v1261
  %1896 = vmatprep.subr.mxu0 0.0
  %1897 = vmatpush2.msra.mxu0 %v1260
  %1898 = vmatprep.subr.mxu0 0.0
  %1899 = vmatpush2.msra.mxu0 %v1259
  %1900 = vmatprep.subr.mxu0 0.0
  %1901 = vmatpush2.msra.mxu0 %v1258
  %1902 = vmatprep.subr.mxu0 0.0
  %1903 = vmatpush2.msra.mxu0 %v1257
  %1904 = vmatprep.subr.mxu0 0.0
  %1905 = vmatpush2.msra.mxu0 %v1256
  %1906 = vmatprep.mubr.f32.mxu0 %v1615
  %1907 = vmatmul.mubr.f32.gmra.mxu0 %v1608
  %v1908 = vpop.f32.mrf.mxu0
  %v1909 = vadd.f32 %v1839, %v1908
  %v1910 = vpop.f32.mrf.mxu0
  %1911 = vdwg.mxu0
  %1912 = vmatprep.subr.mxu0 0.0
  %1913 = vmatpush1.msra.mxu0 %v1287
  %1914 = vmatprep.subr.mxu0 0.0
  %1915 = vmatpush1.msra.mxu0 %v1286
  %1916 = vmatprep.subr.mxu0 0.0
  %1917 = vmatpush1.msra.mxu0 %v1285
  %1918 = vmatprep.subr.mxu0 0.0
  %1919 = vmatpush1.msra.mxu0 %v1284
  %1920 = vmatprep.subr.mxu0 0.0
  %1921 = vmatpush1.msra.mxu0 %v1283
  %1922 = vmatprep.subr.mxu0 0.0
  %1923 = vmatpush1.msra.mxu0 %v1282
  %1924 = vmatprep.subr.mxu0 0.0
  %1925 = vmatpush1.msra.mxu0 %v1281
  %1926 = vmatprep.subr.mxu0 0.0
  %1927 = vmatpush1.msra.mxu0 %v1280
  %1928 = vmatprep.subr.mxu0 0.0
  %1929 = vmatpush1.msra.mxu0 %v1279
  %1930 = vmatprep.subr.mxu0 0.0
  %1931 = vmatpush1.msra.mxu0 %v1278
  %1932 = vmatprep.subr.mxu0 0.0
  %1933 = vmatpush1.msra.mxu0 %v1277
  %1934 = vmatprep.subr.mxu0 0.0
  %1935 = vmatpush1.msra.mxu0 %v1276
  %1936 = vmatprep.subr.mxu0 0.0
  %1937 = vmatpush1.msra.mxu0 %v1275
  %1938 = vmatprep.subr.mxu0 0.0
  %1939 = vmatpush1.msra.mxu0 %v1274
  %1940 = vmatprep.subr.mxu0 0.0
  %1941 = vmatpush1.msra.mxu0 %v1273
  %1942 = vmatprep.subr.mxu0 0.0
  %1943 = vmatpush1.msra.mxu0 %v1272
  %1944 = vmatprep.subr.mxu0 0.0
  %1945 = vmatpush2.msra.mxu0 %v1303
  %1946 = vmatprep.subr.mxu0 0.0
  %1947 = vmatpush2.msra.mxu0 %v1302
  %1948 = vmatprep.subr.mxu0 0.0
  %1949 = vmatpush2.msra.mxu0 %v1301
  %1950 = vmatprep.subr.mxu0 0.0
  %1951 = vmatpush2.msra.mxu0 %v1300
  %1952 = vmatprep.subr.mxu0 0.0
  %1953 = vmatpush2.msra.mxu0 %v1299
  %1954 = vmatprep.subr.mxu0 0.0
  %1955 = vmatpush2.msra.mxu0 %v1298
  %1956 = vmatprep.subr.mxu0 0.0
  %1957 = vmatpush2.msra.mxu0 %v1297
  %1958 = vmatprep.subr.mxu0 0.0
  %1959 = vmatpush2.msra.mxu0 %v1296
  %1960 = vmatprep.subr.mxu0 0.0
  %1961 = vmatpush2.msra.mxu0 %v1295
  %1962 = vmatprep.subr.mxu0 0.0
  %1963 = vmatpush2.msra.mxu0 %v1294
  %1964 = vmatprep.subr.mxu0 0.0
  %1965 = vmatpush2.msra.mxu0 %v1293
  %1966 = vmatprep.subr.mxu0 0.0
  %1967 = vmatpush2.msra.mxu0 %v1292
  %1968 = vmatprep.subr.mxu0 0.0
  %1969 = vmatpush2.msra.mxu0 %v1291
  %1970 = vmatprep.subr.mxu0 0.0
  %1971 = vmatpush2.msra.mxu0 %v1290
  %1972 = vmatprep.subr.mxu0 0.0
  %1973 = vmatpush2.msra.mxu0 %v1289
  %1974 = vmatprep.subr.mxu0 0.0
  %1975 = vmatpush2.msra.mxu0 %v1288
  %1976 = vmatprep.mubr.f32.mxu0 %v1629
  %1977 = vmatmul.mubr.f32.gmra.mxu0 %v1622
  %v1978 = vpop.f32.mrf.mxu0
  %v1979 = vadd.f32 %v1909, %v1978
  %v1980 = vpop.f32.mrf.mxu0
  %1981 = vdwg.mxu0
  %1982 = vmatprep.subr.mxu0 0.0
  %1983 = vmatpush1.msra.mxu0 %v1319
  %1984 = vmatprep.subr.mxu0 0.0
  %1985 = vmatpush1.msra.mxu0 %v1318
  %1986 = vmatprep.subr.mxu0 0.0
  %1987 = vmatpush1.msra.mxu0 %v1317
  %1988 = vmatprep.subr.mxu0 0.0
  %1989 = vmatpush1.msra.mxu0 %v1316
  %1990 = vmatprep.subr.mxu0 0.0
  %1991 = vmatpush1.msra.mxu0 %v1315
  %1992 = vmatprep.subr.mxu0 0.0
  %1993 = vmatpush1.msra.mxu0 %v1314
  %1994 = vmatprep.subr.mxu0 0.0
  %1995 = vmatpush1.msra.mxu0 %v1313
  %1996 = vmatprep.subr.mxu0 0.0
  %1997 = vmatpush1.msra.mxu0 %v1312
  %1998 = vmatprep.subr.mxu0 0.0
  %1999 = vmatpush1.msra.mxu0 %v1311
  %2000 = vmatprep.subr.mxu0 0.0
  %2001 = vmatpush1.msra.mxu0 %v1310
  %2002 = vmatprep.subr.mxu0 0.0
  %2003 = vmatpush1.msra.mxu0 %v1309
  %2004 = vmatprep.subr.mxu0 0.0
  %2005 = vmatpush1.msra.mxu0 %v1308
  %2006 = vmatprep.subr.mxu0 0.0
  %2007 = vmatpush1.msra.mxu0 %v1307
  %2008 = vmatprep.subr.mxu0 0.0
  %2009 = vmatpush1.msra.mxu0 %v1306
  %2010 = vmatprep.subr.mxu0 0.0
  %2011 = vmatpush1.msra.mxu0 %v1305
  %2012 = vmatprep.subr.mxu0 0.0
  %2013 = vmatpush1.msra.mxu0 %v1304
  %2014 = vmatprep.subr.mxu0 0.0
  %2015 = vmatpush2.msra.mxu0 %v1335
  %2016 = vmatprep.subr.mxu0 0.0
  %2017 = vmatpush2.msra.mxu0 %v1334
  %2018 = vmatprep.subr.mxu0 0.0
  %2019 = vmatpush2.msra.mxu0 %v1333
  %2020 = vmatprep.subr.mxu0 0.0
  %2021 = vmatpush2.msra.mxu0 %v1332
  %2022 = vmatprep.subr.mxu0 0.0
  %2023 = vmatpush2.msra.mxu0 %v1331
  %2024 = vmatprep.subr.mxu0 0.0
  %2025 = vmatpush2.msra.mxu0 %v1330
  %2026 = vmatprep.subr.mxu0 0.0
  %2027 = vmatpush2.msra.mxu0 %v1329
  %2028 = vmatprep.subr.mxu0 0.0
  %2029 = vmatpush2.msra.mxu0 %v1328
  %2030 = vmatprep.subr.mxu0 0.0
  %2031 = vmatpush2.msra.mxu0 %v1327
  %2032 = vmatprep.subr.mxu0 0.0
  %2033 = vmatpush2.msra.mxu0 %v1326
  %2034 = vmatprep.subr.mxu0 0.0
  %2035 = vmatpush2.msra.mxu0 %v1325
  %2036 = vmatprep.subr.mxu0 0.0
  %2037 = vmatpush2.msra.mxu0 %v1324
  %2038 = vmatprep.subr.mxu0 0.0
  %2039 = vmatpush2.msra.mxu0 %v1323
  %2040 = vmatprep.subr.mxu0 0.0
  %2041 = vmatpush2.msra.mxu0 %v1322
  %2042 = vmatprep.subr.mxu0 0.0
  %2043 = vmatpush2.msra.mxu0 %v1321
  %2044 = vmatprep.subr.mxu0 0.0
  %2045 = vmatpush2.msra.mxu0 %v1320
  %2046 = vmatprep.mubr.f32.mxu0 %v1643
  %2047 = vmatmul.mubr.f32.gmra.mxu0 %v1636
  %v2048 = vpop.f32.mrf.mxu0
  %v2049 = vadd.f32 %v1979, %v2048
  %v2050 = vpop.f32.mrf.mxu0
  %2051 = vdwg.mxu0
  %2052 = vmatprep.subr.mxu0 0.0
  %2053 = vmatpush1.msra.mxu0 %v1351
  %2054 = vmatprep.subr.mxu0 0.0
  %2055 = vmatpush1.msra.mxu0 %v1350
  %2056 = vmatprep.subr.mxu0 0.0
  %2057 = vmatpush1.msra.mxu0 %v1349
  %2058 = vmatprep.subr.mxu0 0.0
  %2059 = vmatpush1.msra.mxu0 %v1348
  %2060 = vmatprep.subr.mxu0 0.0
  %2061 = vmatpush1.msra.mxu0 %v1347
  %2062 = vmatprep.subr.mxu0 0.0
  %2063 = vmatpush1.msra.mxu0 %v1346
  %2064 = vmatprep.subr.mxu0 0.0
  %2065 = vmatpush1.msra.mxu0 %v1345
  %2066 = vmatprep.subr.mxu0 0.0
  %2067 = vmatpush1.msra.mxu0 %v1344
  %2068 = vmatprep.subr.mxu0 0.0
  %2069 = vmatpush1.msra.mxu0 %v1343
  %2070 = vmatprep.subr.mxu0 0.0
  %2071 = vmatpush1.msra.mxu0 %v1342
  %2072 = vmatprep.subr.mxu0 0.0
  %2073 = vmatpush1.msra.mxu0 %v1341
  %2074 = vmatprep.subr.mxu0 0.0
  %2075 = vmatpush1.msra.mxu0 %v1340
  %2076 = vmatprep.subr.mxu0 0.0
  %2077 = vmatpush1.msra.mxu0 %v1339
  %2078 = vmatprep.subr.mxu0 0.0
  %2079 = vmatpush1.msra.mxu0 %v1338
  %2080 = vmatprep.subr.mxu0 0.0
  %2081 = vmatpush1.msra.mxu0 %v1337
  %2082 = vmatprep.subr.mxu0 0.0
  %2083 = vmatpush1.msra.mxu0 %v1336
  %2084 = vmatprep.subr.mxu0 0.0
  %2085 = vmatpush2.msra.mxu0 %v1367
  %2086 = vmatprep.subr.mxu0 0.0
  %2087 = vmatpush2.msra.mxu0 %v1366
  %2088 = vmatprep.subr.mxu0 0.0
  %2089 = vmatpush2.msra.mxu0 %v1365
  %2090 = vmatprep.subr.mxu0 0.0
  %2091 = vmatpush2.msra.mxu0 %v1364
  %2092 = vmatprep.subr.mxu0 0.0
  %2093 = vmatpush2.msra.mxu0 %v1363
  %2094 = vmatprep.subr.mxu0 0.0
  %2095 = vmatpush2.msra.mxu0 %v1362
  %2096 = vmatprep.subr.mxu0 0.0
  %2097 = vmatpush2.msra.mxu0 %v1361
  %2098 = vmatprep.subr.mxu0 0.0
  %2099 = vmatpush2.msra.mxu0 %v1360
  %2100 = vmatprep.subr.mxu0 0.0
  %2101 = vmatpush2.msra.mxu0 %v1359
  %2102 = vmatprep.subr.mxu0 0.0
  %2103 = vmatpush2.msra.mxu0 %v1358
  %2104 = vmatprep.subr.mxu0 0.0
  %2105 = vmatpush2.msra.mxu0 %v1357
  %2106 = vmatprep.subr.mxu0 0.0
  %2107 = vmatpush2.msra.mxu0 %v1356
  %2108 = vmatprep.subr.mxu0 0.0
  %2109 = vmatpush2.msra.mxu0 %v1355
  %2110 = vmatprep.subr.mxu0 0.0
  %2111 = vmatpush2.msra.mxu0 %v1354
  %2112 = vmatprep.subr.mxu0 0.0
  %2113 = vmatpush2.msra.mxu0 %v1353
  %2114 = vmatprep.subr.mxu0 0.0
  %2115 = vmatpush2.msra.mxu0 %v1352
  %2116 = vmatprep.mubr.f32.mxu0 %v1657
  %2117 = vmatmul.mubr.f32.gmra.mxu0 %v1650
  %v2118 = vpop.f32.mrf.mxu0
  %v2119 = vadd.f32 %v2049, %v2118
  %v2120 = vpop.f32.mrf.mxu0
  %2121 = vdwg.mxu0
  %2122 = vmatprep.subr.mxu0 0.0
  %2123 = vmatpush1.msra.mxu0 %v1383
  %2124 = vmatprep.subr.mxu0 0.0
  %2125 = vmatpush1.msra.mxu0 %v1382
  %2126 = vmatprep.subr.mxu0 0.0
  %2127 = vmatpush1.msra.mxu0 %v1381
  %2128 = vmatprep.subr.mxu0 0.0
  %2129 = vmatpush1.msra.mxu0 %v1380
  %2130 = vmatprep.subr.mxu0 0.0
  %2131 = vmatpush1.msra.mxu0 %v1379
  %2132 = vmatprep.subr.mxu0 0.0
  %2133 = vmatpush1.msra.mxu0 %v1378
  %2134 = vmatprep.subr.mxu0 0.0
  %2135 = vmatpush1.msra.mxu0 %v1377
  %2136 = vmatprep.subr.mxu0 0.0
  %2137 = vmatpush1.msra.mxu0 %v1376
  %2138 = vmatprep.subr.mxu0 0.0
  %2139 = vmatpush1.msra.mxu0 %v1375
  %2140 = vmatprep.subr.mxu0 0.0
  %2141 = vmatpush1.msra.mxu0 %v1374
  %2142 = vmatprep.subr.mxu0 0.0
  %2143 = vmatpush1.msra.mxu0 %v1373
  %2144 = vmatprep.subr.mxu0 0.0
  %2145 = vmatpush1.msra.mxu0 %v1372
  %2146 = vmatprep.subr.mxu0 0.0
  %2147 = vmatpush1.msra.mxu0 %v1371
  %2148 = vmatprep.subr.mxu0 0.0
  %2149 = vmatpush1.msra.mxu0 %v1370
  %2150 = vmatprep.subr.mxu0 0.0
  %2151 = vmatpush1.msra.mxu0 %v1369
  %2152 = vmatprep.subr.mxu0 0.0
  %2153 = vmatpush1.msra.mxu0 %v1368
  %2154 = vmatprep.subr.mxu0 0.0
  %2155 = vmatpush2.msra.mxu0 %v1399
  %2156 = vmatprep.subr.mxu0 0.0
  %2157 = vmatpush2.msra.mxu0 %v1398
  %2158 = vmatprep.subr.mxu0 0.0
  %2159 = vmatpush2.msra.mxu0 %v1397
  %2160 = vmatprep.subr.mxu0 0.0
  %2161 = vmatpush2.msra.mxu0 %v1396
  %2162 = vmatprep.subr.mxu0 0.0
  %2163 = vmatpush2.msra.mxu0 %v1395
  %2164 = vmatprep.subr.mxu0 0.0
  %2165 = vmatpush2.msra.mxu0 %v1394
  %2166 = vmatprep.subr.mxu0 0.0
  %2167 = vmatpush2.msra.mxu0 %v1393
  %2168 = vmatprep.subr.mxu0 0.0
  %2169 = vmatpush2.msra.mxu0 %v1392
  %2170 = vmatprep.subr.mxu0 0.0
  %2171 = vmatpush2.msra.mxu0 %v1391
  %2172 = vmatprep.subr.mxu0 0.0
  %2173 = vmatpush2.msra.mxu0 %v1390
  %2174 = vmatprep.subr.mxu0 0.0
  %2175 = vmatpush2.msra.mxu0 %v1389
  %2176 = vmatprep.subr.mxu0 0.0
  %2177 = vmatpush2.msra.mxu0 %v1388
  %2178 = vmatprep.subr.mxu0 0.0
  %2179 = vmatpush2.msra.mxu0 %v1387
  %2180 = vmatprep.subr.mxu0 0.0
  %2181 = vmatpush2.msra.mxu0 %v1386
  %2182 = vmatprep.subr.mxu0 0.0
  %2183 = vmatpush2.msra.mxu0 %v1385
  %2184 = vmatprep.subr.mxu0 0.0
  %2185 = vmatpush2.msra.mxu0 %v1384
  %2186 = vmatprep.mubr.f32.mxu0 %v1671
  %2187 = vmatmul.mubr.f32.gmra.mxu0 %v1664
  %v2188 = vpop.f32.mrf.mxu0
  %v2189 = vadd.f32 %v2119, %v2188
  %v2190 = vpop.f32.mrf.mxu0
  %2191 = vdwg.mxu0
  %2192 = vmatprep.subr.mxu0 0.0
  %2193 = vmatpush1.msra.mxu0 %v1415
  %2194 = vmatprep.subr.mxu0 0.0
  %2195 = vmatpush1.msra.mxu0 %v1414
  %2196 = vmatprep.subr.mxu0 0.0
  %2197 = vmatpush1.msra.mxu0 %v1413
  %2198 = vmatprep.subr.mxu0 0.0
  %2199 = vmatpush1.msra.mxu0 %v1412
  %2200 = vmatprep.subr.mxu0 0.0
  %2201 = vmatpush1.msra.mxu0 %v1411
  %2202 = vmatprep.subr.mxu0 0.0
  %2203 = vmatpush1.msra.mxu0 %v1410
  %2204 = vmatprep.subr.mxu0 0.0
  %2205 = vmatpush1.msra.mxu0 %v1409
  %2206 = vmatprep.subr.mxu0 0.0
  %2207 = vmatpush1.msra.mxu0 %v1408
  %2208 = vmatprep.subr.mxu0 0.0
  %2209 = vmatpush1.msra.mxu0 %v1407
  %2210 = vmatprep.subr.mxu0 0.0
  %2211 = vmatpush1.msra.mxu0 %v1406
  %2212 = vmatprep.subr.mxu0 0.0
  %2213 = vmatpush1.msra.mxu0 %v1405
  %2214 = vmatprep.subr.mxu0 0.0
  %2215 = vmatpush1.msra.mxu0 %v1404
  %2216 = vmatprep.subr.mxu0 0.0
  %2217 = vmatpush1.msra.mxu0 %v1403
  %2218 = vmatprep.subr.mxu0 0.0
  %2219 = vmatpush1.msra.mxu0 %v1402
  %2220 = vmatprep.subr.mxu0 0.0
  %2221 = vmatpush1.msra.mxu0 %v1401
  %2222 = vmatprep.subr.mxu0 0.0
  %2223 = vmatpush1.msra.mxu0 %v1400
  %2224 = vmatprep.subr.mxu0 0.0
  %2225 = vmatpush2.msra.mxu0 %v1431
  %2226 = vmatprep.subr.mxu0 0.0
  %2227 = vmatpush2.msra.mxu0 %v1430
  %2228 = vmatprep.subr.mxu0 0.0
  %2229 = vmatpush2.msra.mxu0 %v1429
  %2230 = vmatprep.subr.mxu0 0.0
  %2231 = vmatpush2.msra.mxu0 %v1428
  %2232 = vmatprep.subr.mxu0 0.0
  %2233 = vmatpush2.msra.mxu0 %v1427
  %2234 = vmatprep.subr.mxu0 0.0
  %2235 = vmatpush2.msra.mxu0 %v1426
  %2236 = vmatprep.subr.mxu0 0.0
  %2237 = vmatpush2.msra.mxu0 %v1425
  %2238 = vmatprep.subr.mxu0 0.0
  %2239 = vmatpush2.msra.mxu0 %v1424
  %2240 = vmatprep.subr.mxu0 0.0
  %2241 = vmatpush2.msra.mxu0 %v1423
  %2242 = vmatprep.subr.mxu0 0.0
  %2243 = vmatpush2.msra.mxu0 %v1422
  %2244 = vmatprep.subr.mxu0 0.0
  %2245 = vmatpush2.msra.mxu0 %v1421
  %2246 = vmatprep.subr.mxu0 0.0
  %2247 = vmatpush2.msra.mxu0 %v1420
  %2248 = vmatprep.subr.mxu0 0.0
  %2249 = vmatpush2.msra.mxu0 %v1419
  %2250 = vmatprep.subr.mxu0 0.0
  %2251 = vmatpush2.msra.mxu0 %v1418
  %2252 = vmatprep.subr.mxu0 0.0
  %2253 = vmatpush2.msra.mxu0 %v1417
  %2254 = vmatprep.subr.mxu0 0.0
  %2255 = vmatpush2.msra.mxu0 %v1416
  %2256 = vmatprep.mubr.f32.mxu0 %v1685
  %2257 = vmatmul.mubr.f32.gmra.mxu0 %v1678
  %v2258 = vpop.f32.mrf.mxu0
  %v2259 = vadd.f32 %v2189, %v2258
  %v2260 = vpop.f32.mrf.mxu0
  %2261 = vdwg.mxu0
  %v2262 = vmul.f32 %v2259, %v2259
  %2263 = vadd.xlane.f32.xlu0 %v2262
  %v2264 = vpop.xlane.xlu0 %2263
  %v2265 = vadd.f32 %v2264, 1e-12
  %v2266 = vrsqrt.pop %v2265
  %v2267 = vmul.f32 %v2259, %v2266
  %v2268 = vld [vmem:[%s4] sm:$0xff]
  %v2269 = vld [vmem:[%s4 + $0x8] sm:$0xff]
  %v2270 = vld [vmem:[%s4 + $0x10] sm:$0xff]
  %v2271 = vld [vmem:[%s4 + $0x18] sm:$0xff]
  %v2272 = vld [vmem:[%s4 + $0x20] sm:$0xff]
  %v2273 = vld [vmem:[%s4 + $0x28] sm:$0xff]
  %v2274 = vld [vmem:[%s4 + $0x30] sm:$0xff]
  %v2275 = vld [vmem:[%s4 + $0x38] sm:$0xff]
  %v2276 = vld [vmem:[%s4 + $0x40] sm:$0xff]
  %v2277 = vld [vmem:[%s4 + $0x48] sm:$0xff]
  %v2278 = vld [vmem:[%s4 + $0x50] sm:$0xff]
  %v2279 = vld [vmem:[%s4 + $0x58] sm:$0xff]
  %v2280 = vld [vmem:[%s4 + $0x60] sm:$0xff]
  %v2281 = vld [vmem:[%s4 + $0x68] sm:$0xff]
  %v2282 = vld [vmem:[%s4 + $0x70] sm:$0xff]
  %v2283 = vld [vmem:[%s4 + $0x78] sm:$0xff]
  %v2284 = vld [vmem:[%s4 + $0x80] sm:$0xff]
  %v2285 = vld [vmem:[%s4 + $0x88] sm:$0xff]
  %v2286 = vld [vmem:[%s4 + $0x90] sm:$0xff]
  %v2287 = vld [vmem:[%s4 + $0x98] sm:$0xff]
  %v2288 = vld [vmem:[%s4 + $0xa0] sm:$0xff]
  %v2289 = vld [vmem:[%s4 + $0xa8] sm:$0xff]
  %v2290 = vld [vmem:[%s4 + $0xb0] sm:$0xff]
  %v2291 = vld [vmem:[%s4 + $0xb8] sm:$0xff]
  %v2292 = vld [vmem:[%s4 + $0xc0] sm:$0xff]
  %v2293 = vld [vmem:[%s4 + $0xc8] sm:$0xff]
  %v2294 = vld [vmem:[%s4 + $0xd0] sm:$0xff]
  %v2295 = vld [vmem:[%s4 + $0xd8] sm:$0xff]
  %v2296 = vld [vmem:[%s4 + $0xe0] sm:$0xff]
  %v2297 = vld [vmem:[%s4 + $0xe8] sm:$0xff]
  %v2298 = vld [vmem:[%s4 + $0xf0] sm:$0xff]
  %v2299 = vld [vmem:[%s4 + $0xf8] sm:$0xff]
  %v2300 = vld [vmem:[%s4 + $0x100] sm:$0xff]
  %v2301 = vld [vmem:[%s4 + $0x108] sm:$0xff]
  %v2302 = vld [vmem:[%s4 + $0x110] sm:$0xff]
  %v2303 = vld [vmem:[%s4 + $0x118] sm:$0xff]
  %v2304 = vld [vmem:[%s4 + $0x120] sm:$0xff]
  %v2305 = vld [vmem:[%s4 + $0x128] sm:$0xff]
  %v2306 = vld [vmem:[%s4 + $0x130] sm:$0xff]
  %v2307 = vld [vmem:[%s4 + $0x138] sm:$0xff]
  %v2308 = vld [vmem:[%s4 + $0x140] sm:$0xff]
  %v2309 = vld [vmem:[%s4 + $0x148] sm:$0xff]
  %v2310 = vld [vmem:[%s4 + $0x150] sm:$0xff]
  %v2311 = vld [vmem:[%s4 + $0x158] sm:$0xff]
  %v2312 = vld [vmem:[%s4 + $0x160] sm:$0xff]
  %v2313 = vld [vmem:[%s4 + $0x168] sm:$0xff]
  %v2314 = vld [vmem:[%s4 + $0x170] sm:$0xff]
  %v2315 = vld [vmem:[%s4 + $0x178] sm:$0xff]
  %2316 = vmatprep.subr.mxu0 %v2314
  %2317 = vmatpush1.msra.mxu0 %v2313
  %2318 = vmatprep.subr.mxu0 %v2311
  %2319 = vmatpush1.msra.mxu0 %v2310
  %2320 = vmatprep.subr.mxu0 %v2308
  %2321 = vmatpush1.msra.mxu0 %v2307
  %2322 = vmatprep.subr.mxu0 %v2305
  %2323 = vmatpush1.msra.mxu0 %v2304
  %2324 = vmatprep.subr.mxu0 %v2302
  %2325 = vmatpush1.msra.mxu0 %v2301
  %2326 = vmatprep.subr.mxu0 %v2299
  %2327 = vmatpush1.msra.mxu0 %v2298
  %2328 = vmatprep.subr.mxu0 %v2296
  %2329 = vmatpush1.msra.mxu0 %v2295
  %2330 = vmatprep.subr.mxu0 %v2293
  %2331 = vmatpush1.msra.mxu0 %v2292
  %2332 = vmatprep.subr.mxu0 %v2290
  %2333 = vmatpush1.msra.mxu0 %v2289
  %2334 = vmatprep.subr.mxu0 %v2287
  %2335 = vmatpush1.msra.mxu0 %v2286
  %2336 = vmatprep.subr.mxu0 %v2284
  %2337 = vmatpush1.msra.mxu0 %v2283
  %2338 = vmatprep.subr.mxu0 %v2281
  %2339 = vmatpush1.msra.mxu0 %v2280
  %2340 = vmatprep.subr.mxu0 %v2278
  %2341 = vmatpush1.msra.mxu0 %v2277
  %2342 = vmatprep.subr.mxu0 %v2275
  %2343 = vmatpush1.msra.mxu0 %v2274
  %2344 = vmatprep.subr.mxu0 %v2272
  %2345 = vmatpush1.msra.mxu0 %v2271
  %2346 = vmatprep.subr.mxu0 %v2269
  %2347 = vmatpush1.msra.mxu0 %v2268
  %2348 = vmatprep.subr.mxu0 0.0
  %2349 = vmatpush2.msra.mxu0 0.0
  %2350 = vmatprep.subr.mxu0 0.0
  %2351 = vmatpush2.msra.mxu0 0.0
  %2352 = vmatprep.subr.mxu0 0.0
  %2353 = vmatpush2.msra.mxu0 0.0
  %2354 = vmatprep.subr.mxu0 0.0
  %2355 = vmatpush2.msra.mxu0 0.0
  %2356 = vmatprep.subr.mxu0 0.0
  %2357 = vmatpush2.msra.mxu0 0.0
  %2358 = vmatprep.subr.mxu0 0.0
  %2359 = vmatpush2.msra.mxu0 0.0
  %2360 = vmatprep.subr.mxu0 0.0
  %2361 = vmatpush2.msra.mxu0 0.0
  %2362 = vmatprep.subr.mxu0 0.0
  %2363 = vmatpush2.msra.mxu0 0.0
  %2364 = vmatprep.subr.mxu0 0.0
  %2365 = vmatpush2.msra.mxu0 0.0
  %2366 = vmatprep.subr.mxu0 0.0
  %2367 = vmatpush2.msra.mxu0 0.0
  %2368 = vmatprep.subr.mxu0 0.0
  %2369 = vmatpush2.msra.mxu0 0.0
  %2370 = vmatprep.subr.mxu0 0.0
  %2371 = vmatpush2.msra.mxu0 0.0
  %2372 = vmatprep.subr.mxu0 0.0
  %2373 = vmatpush2.msra.mxu0 0.0
  %2374 = vmatprep.subr.mxu0 0.0
  %2375 = vmatpush2.msra.mxu0 0.0
  %2376 = vmatprep.subr.mxu0 0.0
  %2377 = vmatpush2.msra.mxu0 0.0
  %2378 = vmatprep.subr.mxu0 0.0
  %2379 = vmatpush2.msra.mxu0 0.0
  %2380 = vmatprep.mubr.f32.mxu0 0.0
  %2381 = vmatmul.mubr.f32.gmra.mxu0 %v2267
  %v2382 = vpop.f32.mrf.mxu0
  %v2383 = vadd.f32 0.0, %v2382
  %v2384 = vpop.f32.mrf.mxu0
  %v2385 = vadd.f32 0.0, %v2384
  %2386 = vdwg.mxu0
  %2387 = vmatprep.subr.mxu0 0.0
  %2388 = vmatpush1.msra.mxu0 %v2315
  %2389 = vmatprep.subr.mxu0 0.0
  %2390 = vmatpush1.msra.mxu0 %v2312
  %2391 = vmatprep.subr.mxu0 0.0
  %2392 = vmatpush1.msra.mxu0 %v2309
  %2393 = vmatprep.subr.mxu0 0.0
  %2394 = vmatpush1.msra.mxu0 %v2306
  %2395 = vmatprep.subr.mxu0 0.0
  %2396 = vmatpush1.msra.mxu0 %v2303
  %2397 = vmatprep.subr.mxu0 0.0
  %2398 = vmatpush1.msra.mxu0 %v2300
  %2399 = vmatprep.subr.mxu0 0.0
  %2400 = vmatpush1.msra.mxu0 %v2297
  %2401 = vmatprep.subr.mxu0 0.0
  %2402 = vmatpush1.msra.mxu0 %v2294
  %2403 = vmatprep.subr.mxu0 0.0
  %2404 = vmatpush1.msra.mxu0 %v2291
  %2405 = vmatprep.subr.mxu0 0.0
  %2406 = vmatpush1.msra.mxu0 %v2288
  %2407 = vmatprep.subr.mxu0 0.0
  %2408 = vmatpush1.msra.mxu0 %v2285
  %2409 = vmatprep.subr.mxu0 0.0
  %2410 = vmatpush1.msra.mxu0 %v2282
  %2411 = vmatprep.subr.mxu0 0.0
  %2412 = vmatpush1.msra.mxu0 %v2279
  %2413 = vmatprep.subr.mxu0 0.0
  %2414 = vmatpush1.msra.mxu0 %v2276
  %2415 = vmatprep.subr.mxu0 0.0
  %2416 = vmatpush1.msra.mxu0 %v2273
  %2417 = vmatprep.subr.mxu0 0.0
  %2418 = vmatpush1.msra.mxu0 %v2270
  %2419 = vmatprep.subr.mxu0 0.0
  %2420 = vmatpush2.msra.mxu0 0.0
  %2421 = vmatprep.subr.mxu0 0.0
  %2422 = vmatpush2.msra.mxu0 0.0
  %2423 = vmatprep.subr.mxu0 0.0
  %2424 = vmatpush2.msra.mxu0 0.0
  %2425 = vmatprep.subr.mxu0 0.0
  %2426 = vmatpush2.msra.mxu0 0.0
  %2427 = vmatprep.subr.mxu0 0.0
  %2428 = vmatpush2.msra.mxu0 0.0
  %2429 = vmatprep.subr.mxu0 0.0
  %2430 = vmatpush2.msra.mxu0 0.0
  %2431 = vmatprep.subr.mxu0 0.0
  %2432 = vmatpush2.msra.mxu0 0.0
  %2433 = vmatprep.subr.mxu0 0.0
  %2434 = vmatpush2.msra.mxu0 0.0
  %2435 = vmatprep.subr.mxu0 0.0
  %2436 = vmatpush2.msra.mxu0 0.0
  %2437 = vmatprep.subr.mxu0 0.0
  %2438 = vmatpush2.msra.mxu0 0.0
  %2439 = vmatprep.subr.mxu0 0.0
  %2440 = vmatpush2.msra.mxu0 0.0
  %2441 = vmatprep.subr.mxu0 0.0
  %2442 = vmatpush2.msra.mxu0 0.0
  %2443 = vmatprep.subr.mxu0 0.0
  %2444 = vmatpush2.msra.mxu0 0.0
  %2445 = vmatprep.subr.mxu0 0.0
  %2446 = vmatpush2.msra.mxu0 0.0
  %2447 = vmatprep.subr.mxu0 0.0
  %2448 = vmatpush2.msra.mxu0 0.0
  %2449 = vmatprep.subr.mxu0 0.0
  %2450 = vmatpush2.msra.mxu0 0.0
  %2451 = vmatprep.mubr.f32.mxu0 0.0
  %2452 = vmatmul.mubr.f32.gmra.mxu0 %v2267
  %v2453 = vpop.f32.mrf.mxu0
  %v2454 = vadd.f32 0.0, %v2453
  %v2455 = vpop.f32.mrf.mxu0
  %2456 = vdwg.mxu0
  %v2457 = vmax.f32 %v2383, %v2385
  %v2458 = vmax.f32 %v2457, %v2454
  %2459 = vst [vmem:[%s5] sm:$0xff] %v2458
  %2460 = vmax.xlane.f32.xlu0 %v2458
  %v2461 = vpop.xlane.xlu0 %2460
  %vm2462 = vcmask 7168
  %2463 = vst.msk [vmem:[%s6] sm:$0xff] %vm2462, %v2461
  %v2464 = vlaneseq
  %v2465 = vand.u32 %v2464, 127
  %vm2466 = vcmp.eq.f32.partialorder %v2458, %v2461
  %v2467 = vsel %vm2466, %v2465, 128
  %v2468 = vand.u32 %v2467, 65535
  %v2469 = vshra.s32 %v2467, 16
  %v2470 = vcvt.s32.f32 %v2468
  %v2471 = vcvt.s32.f32 %v2469
  %2472 = vmin.xlane.f32.xlu0 %v2471
  %v2473 = vpop.xlane.xlu0 %2472
  %vm2474 = vcmp.eq.f32.partialorder %v2471, %v2473
  %v2475 = vsel %vm2474, %v2470, inf
  %2476 = vmin.xlane.f32.xlu0 %v2475
  %v2477 = vpop.xlane.xlu0 %2476
  %v2478 = vcvt.f32.s32 %v2477
  %v2479 = vcvt.f32.s32 %v2473
  %v2480 = vshll.u32 %v2479, 16
  %v2481 = vadd.s32 %v2480, %v2478
  %2482 = vst.msk [vmem:[%s7] sm:$0xff] %vm2462, %v2481
  %v2483 = vmul.f32 %v2458, %v2458
  %v2484 = vsub.f32 1.0, %v2483
  %v2485 = vmax.f32 %v2484, 0.0
  %v2486 = vrsqrt.pop %v2485
  %v2487 = vmul.f32 %v2485, %v2486
  %vm2488 = vcmp.eq.f32.partialorder %v2485, inf
  %v2489 = vsel %vm2488, %v2485, %v2487
  %vm2490 = vcmp.eq.f32.partialorder %v2485, 0.0
  %v2491 = vand.u32 %v2485, 2147483648
  %v2492 = vsel %vm2490, %v2491, %v2489
  %v2493 = vmul.f32 %v2458, 0.87758255
  %v2494 = vmul.f32 %v2492, 0.47942555
  %v2495 = vsub.f32 %v2493, %v2494
  %vm2496 = vcmp.gt.f32.partialorder %v2458, -0.87758255
  %v2497 = vsub.f32 %v2458, 0.23971277
  %v2498 = vsel %vm2496, %v2495, %v2497
  %v2499 = vld [vmem:[%s1] sm:$0xff]
  %2500 = vset.pattern.permute.xlu0 0
  %2501 = vperm.xlu0 %2500, %v2499
  %v2502 = vpop.permute.xlu0 %2501
  %vm2503 = vcmp.eq.s32.totalorder %v2465, %v2502
  %v2504 = vsel %vm2503, 1, 0
  %v2505 = vcvt.s32.f32 %v2504
  %v2506 = vmul.f32 %v2505, %v2498
  %v2507 = vsub.f32 1.0, %v2505
  %v2508 = vmul.f32 %v2507, %v2458
  %v2509 = vadd.f32 %v2506, %v2508
  %v2510 = vmul.f32 %v2509, 30.0
  %2511 = vmax.xlane.f32.xlu0 %v2510
  %v2512 = vpop.xlane.xlu0 %2511
  %v2513 = vsub.f32 %v2510, %v2512
  %v2514 = vmul.f32 %v2513, 1.442695
  %v2515 = vpow.pop %v2514
  %2516 = vadd.xlane.f32.xlu0 %v2515
  %v2517 = vpop.xlane.xlu0 %2516
  %v2518 = vlog2.pop %v2517
  %v2519 = vmul.f32 %v2518, 0.6931472
  %v2520 = vadd.f32 %v2512, %v2519
  %v2521 = vmul.f32 %v2505, %v2510
  %2522 = vadd.xlane.f32.xlu0 %v2521
  %v2523 = vpop.xlane.xlu0 %2522
  %v2524 = vsub.f32 %v2520, %v2523
  %2525 = vst.msk [vmem:[%s8] sm:$0xff] %vm2462, %v2524
  // Predicated region
  $region22: #{metric_learning_forward.1} parent=0 // pred_check
    _
  $region23: #{metric_learning_forward.1} parent=0 // pred_check_branch
    %2527 = sbr.rel (0) target = $region25
  $region24: #{metric_learning_forward.1} parent=0 // pred_region
    _
  $region25: #{metric_learning_forward.1} parent=0 // pred_fallthru
    _
  // Predicated region
  $region26: #{metric_learning_forward.1} parent=0 // pred_check
    _
  $region27: #{metric_learning_forward.1} parent=0 // pred_check_branch
    %2529 = sbr.rel (0) target = $region29
  $region28: #{metric_learning_forward.1} parent=0 // pred_region
    _
  $region29: #{metric_learning_forward.1} parent=0 // pred_fallthru
    _
  // Predicated region
  $region30: #{metric_learning_forward.1} parent=0 // pred_check
    _
  $region31: #{metric_learning_forward.1} parent=0 // pred_check_branch
    %2531 = sbr.rel (0) target = $region33
  $region32: #{metric_learning_forward.1} parent=0 // pred_region
    _
  $region33: #{metric_learning_forward.1} parent=0 // pred_fallthru
    _
  // Predicated region
  $region34: #{metric_learning_forward.1} parent=0 // pred_check
    _
  $region35: #{metric_learning_forward.1} parent=0 // pred_check_branch
    %2533 = sbr.rel (0) target = $region37
  $region36: #{metric_learning_forward.1} parent=0 // pred_region
    _
  $region37: #{metric_learning_forward.1} parent=0 // pred_fallthru
    _
  // Predicated region
  $region38: #{metric_learning_forward.1} parent=0 // pred_check
    _
  $region39: #{metric_learning_forward.1} parent=0 // pred_check_branch
    %2535 = sbr.rel (0) target = $region41
  $region40: #{metric_learning_forward.1} parent=0 // pred_region
    _
  $region41: #{metric_learning_forward.1} parent=0 // pred_fallthru
    _
  // Predicated region
  $region42: #{metric_learning_forward.1} parent=0 // pred_check
    _
  $region43: #{metric_learning_forward.1} parent=0 // pred_check_branch
    %2537 = sbr.rel (0) target = $region45
  $region44: #{metric_learning_forward.1} parent=0 // pred_region
    _
  $region45: #{metric_learning_forward.1} parent=0 // pred_fallthru
    _
  // Predicated region
  $region46: #{metric_learning_forward.1} parent=0 // pred_check
    _
  $region47: #{metric_learning_forward.1} parent=0 // pred_check_branch
    %2539 = sbr.rel (0) target = $region49
  $region48: #{metric_learning_forward.1} parent=0 // pred_region
    _
  $region49: #{metric_learning_forward.1} parent=0 // pred_fallthru
    _
  // Predicated region
  $region50: #{metric_learning_forward.1} parent=0 // pred_check
    _
  $region51: #{metric_learning_forward.1} parent=0 // pred_check_branch
    %2541 = sbr.rel (0) target = $region53
  $region52: #{metric_learning_forward.1} parent=0 // pred_region
    _
  $region53: #{metric_learning_forward.1} parent=0 // pred_fallthru
    _

</llo_original>
